<compile_context>
chip_gen: v7x
topology: tpu7x:2x2x1
jax: 0.10.0
libtpu: 0.0.40
codegen_flags: <defaults>
</compile_context>

<pallas_src>
import jax
import jax.numpy as jnp
from jax.experimental import pallas as pl
from jax.experimental.pallas import tpu as pltpu


def _round_up(x, m):
    return ((x + m - 1) // m) * m


# ---------------------------------------------------------------------------
# Fused kernel: one grid step = (batch b, token tile t, entity tile q)
# ---------------------------------------------------------------------------
def _ebp_kernel(tok_ref, ent_ref, wt_ref, bt_ref, we_ref, be_ref, wb_ref,
                bias_ref, out_ref):
    # Fused projections (MXU).  Recomputed per step: the MXU slot is otherwise
    # idle and this work is fully hidden under the VPU-bound phase below.
    tok_p = jnp.dot(tok_ref[0], wt_ref[...],
                    preferred_element_type=jnp.float32) + bt_ref[...]    # (Tt, H)
    ent_p = jnp.dot(ent_ref[0], we_ref[...],
                    preferred_element_type=jnp.float32) + be_ref[...]    # (Qb, H)

    # Broadcast add + relu + boundary reduction: VPU multiply + lane reduce
    # (replaces the N=1 MXU matmul of the original module).
    mat = tok_p[None, :, :] + ent_p[:, None, :]                          # (Qb, Tt, H)
    act = jnp.maximum(mat, 0.0)
    logits = jnp.sum(act * wb_ref[...][None, :, :], axis=-1)             # (Qb, Tt) f32

    # bias row: b_b at valid tokens, -10000 sentinel at masked/padded tokens.
    # Reproduce masked_fill exactly: masked positions become exactly -10000.
    bias = bias_ref[0]                                                   # (1, Tt)
    logits = jnp.where(bias < -5000.0, -10000.0, logits + bias)
    out_ref[0] = jax.nn.sigmoid(logits)


# ---------------------------------------------------------------------------
# Wrapper
# ---------------------------------------------------------------------------
def entity_boundary_predictor(token_embedding, entity_embedding, token_mask,
                              W_t, b_t, W_e, b_e, w_b, b_b,
                              *, mxu_dtype=jnp.float32,
                              intermediate_budget_bytes=16 * 1024 * 1024):
    """Weights use the x @ W + b convention (W is (H_in, H_out), i.e. PyTorch
    Linear.weight transposed).  Set mxu_dtype=jnp.bfloat16 for bf16 MXU; raise
    intermediate_budget_bytes (e.g. to 32 MiB) on v5e/v6e (128 MiB VMEM)."""
    B, T, H = token_embedding.shape
    _, Q, _ = entity_embedding.shape
    f32 = jnp.float32

    # ---- tile sizing: bound the (Qb, T_tile, H) f32 intermediate -------------
    T_tile = min(512, _round_up(T, 128))
    Qb = max(8, min(64, _round_up(Q, 8)))
    while Qb > 8 and Qb * T_tile * H * 4 > intermediate_budget_bytes:
        Qb -= 8
    while T_tile > 128 and Qb * T_tile * H * 4 > intermediate_budget_bytes:
        T_tile //= 2
    T_pad = _round_up(T, T_tile)
    Q_pad = _round_up(Q, Qb)

    # ---- pad the RAW inputs before any compute (no post-projection plumbing) --
    tok = token_embedding
    ent = entity_embedding
    if T_pad != T:
        tok = jnp.pad(tok, ((0, 0), (0, T_pad - T), (0, 0)))
    if Q_pad != Q:
        ent = jnp.pad(ent, ((0, 0), (0, Q_pad - Q), (0, 0)))
    tok = tok.astype(mxu_dtype)
    ent = ent.astype(mxu_dtype)
    W_t_c = W_t.astype(mxu_dtype)
    W_e_c = W_e.astype(mxu_dtype)
    b_t_c = b_t.reshape(1, H).astype(f32)
    b_e_c = b_e.reshape(1, H).astype(f32)
    w_b_c = w_b.reshape(1, H).astype(f32)

    # ---- fold token_mask + scalar boundary bias into one f32 row --------------
    mask = token_mask.astype(bool)
    if T_pad != T:
        mask = jnp.pad(mask, ((0, 0), (0, T_pad - T)), constant_values=False)
    bias_row = jnp.where(mask, b_b.reshape(()).astype(f32),
                         jnp.float32(-10000.0)).reshape(B, 1, T_pad)

    # ---- per-step VMEM footprint estimate -> explicit scoped-VMEM limit -------
    it = jnp.dtype(mxu_dtype).itemsize
    est = (3 * Qb * T_tile * H * 4          # mat / act / prod f32 intermediates
           + 2 * T_tile * H * it            # token tile (double-buffered)
           + 2 * Qb * H * it                # entity tile (double-buffered)
           + 2 * Qb * T_tile * 4            # output tile (double-buffered)
           + 4 * H * H * it                 # resident W_t, W_e
           + 2 * (3 * H + T_tile) * 4       # bias rows / w_b
           + (2 << 20))                     # Mosaic internal scratch headroom
    vmem_limit = int(min(max(est, 32 * 1024 * 1024), 64 * 1024 * 1024))

    grid = (B, T_pad // T_tile, Q_pad // Qb)

    out = pl.pallas_call(
        _ebp_kernel,
        out_shape=jax.ShapeDtypeStruct((B, Q_pad, T_pad), f32),
        grid_spec=pltpu.PrefetchScalarGridSpec(
            num_scalar_prefetch=0,
            grid=grid,
            in_specs=[
                pl.BlockSpec((1, T_tile, H), lambda b, t, q: (b, t, 0)),  # tokens
                pl.BlockSpec((1, Qb, H),     lambda b, t, q: (b, q, 0)),  # entities
                pl.BlockSpec((H, H),         lambda b, t, q: (0, 0)),     # W_t
                pl.BlockSpec((1, H),         lambda b, t, q: (0, 0)),     # b_t
                pl.BlockSpec((H, H),         lambda b, t, q: (0, 0)),     # W_e
                pl.BlockSpec((1, H),         lambda b, t, q: (0, 0)),     # b_e
                pl.BlockSpec((1, H),         lambda b, t, q: (0, 0)),     # w_b
                pl.BlockSpec((1, 1, T_tile), lambda b, t, q: (b, 0, t)),  # mask/bias
            ],
            out_specs=pl.BlockSpec((1, Qb, T_tile), lambda b, t, q: (b, q, t)),
        ),
        compiler_params=pltpu.CompilerParams(
            dimension_semantics=("parallel", "parallel", "parallel"),
            vmem_limit_bytes=vmem_limit),
    )(tok, ent, W_t_c, b_t_c, W_e_c, b_e_c, w_b_c, bias_row)

    return out[:, :Q, :T]


def _reference(token_embedding, entity_embedding, token_mask,
               W_t, b_t, W_e, b_e, w_b, b_b):
    tok_p = token_embedding @ W_t + b_t
    ent_p = entity_embedding @ W_e + b_e
    mat = tok_p[:, None, :, :] + ent_p[:, :, None, :]
    logits = jnp.maximum(mat, 0.0) @ w_b + b_b[0]
    logits = jnp.where(token_mask[:, None, :], logits, -10000.0)
    return jax.nn.sigmoid(logits)


if __name__ == "__main__":
    B, T, Q, H = 2, 16, 8, 32

    key = jax.random.PRNGKey(0)
    k = jax.random.split(key, 8)

    token_embedding = jax.random.normal(k[0], (B, T, H), dtype=jnp.float32)
    entity_embedding = jax.random.normal(k[1], (B, Q, H), dtype=jnp.float32)
    token_mask = jax.random.uniform(k[2], (B, T)) > 0.3

    # Deterministic synthetic "Linear" parameters (x @ W + b convention).
    W_t = jax.random.normal(k[3], (H, H), dtype=jnp.float32) * 0.05
    b_t = jax.random.normal(k[4], (H,), dtype=jnp.float32) * 0.05
    W_e = jax.random.normal(k[5], (H, H), dtype=jnp.float32) * 0.05
    b_e = jax.random.normal(k[6], (H,), dtype=jnp.float32) * 0.05
    w_b = jax.random.normal(k[7], (H,), dtype=jnp.float32) * 0.05
    b_b = jnp.array([0.01], dtype=jnp.float32)

    ref = _reference(token_embedding, entity_embedding, token_mask,
                     W_t, b_t, W_e, b_e, w_b, b_b)

    # f32 path (tight validation).
    out = entity_boundary_predictor(token_embedding, entity_embedding, token_mask,
                                    W_t, b_t, W_e, b_e, w_b, b_b)
    out = jax.block_until_ready(out)
    assert out.shape == (B, Q, T)
    assert jnp.allclose(out, ref, atol=1e-5, rtol=1e-5), "f32 mismatch vs reference"

    # bf16-MXU path (recommended for production on all generations).
    out_bf16 = entity_boundary_predictor(token_embedding, entity_embedding,
                                         token_mask, W_t, b_t, W_e, b_e, w_b, b_b,
                                         mxu_dtype=jnp.bfloat16)
    out_bf16 = jax.block_until_ready(out_bf16)
    assert jnp.allclose(out_bf16, ref, atol=2e-2, rtol=2e-2), "bf16 mismatch vs reference"

    print("KERNEL_OK")
</pallas_src>

<mosaic_0001>
module attributes {stable_mosaic.version = 11 : i64} {
  func.func @_ebp_kernel(%arg0: i32, %arg1: i32, %arg2: i32, %arg3: memref<1x128x32xf32, #tpu.memory_space<vmem>>, %arg4: memref<1x8x32xf32, #tpu.memory_space<vmem>>, %arg5: memref<32x32xf32, #tpu.memory_space<vmem>>, %arg6: memref<1x32xf32, #tpu.memory_space<vmem>>, %arg7: memref<32x32xf32, #tpu.memory_space<vmem>>, %arg8: memref<1x32xf32, #tpu.memory_space<vmem>>, %arg9: memref<1x32xf32, #tpu.memory_space<vmem>>, %arg10: memref<1x1x128xf32, #tpu.memory_space<vmem>>, %arg11: memref<1x8x128xf32, #tpu.memory_space<vmem>>) attributes {dimension_semantics = [#tpu.dimension_semantics<parallel>, #tpu.dimension_semantics<parallel>, #tpu.dimension_semantics<parallel>], iteration_bounds = array<i64: 2, 1, 1>, scalar_prefetch = 0 : i64, scratch_operands = 0 : i64, tpu.core_type = #tpu.core_type<tc>, window_params = [{transform_indices = @transform_0, window_bounds = array<i64: 1, 128, 32>}, {transform_indices = @transform_1, window_bounds = array<i64: 1, 8, 32>}, {pipeline_mode = #tpu.pipeline_mode<synchronous>, transform_indices = @transform_2, window_bounds = array<i64: 32, 32>}, {pipeline_mode = #tpu.pipeline_mode<synchronous>, transform_indices = @transform_3, window_bounds = array<i64: 1, 32>}, {pipeline_mode = #tpu.pipeline_mode<synchronous>, transform_indices = @transform_4, window_bounds = array<i64: 32, 32>}, {pipeline_mode = #tpu.pipeline_mode<synchronous>, transform_indices = @transform_5, window_bounds = array<i64: 1, 32>}, {pipeline_mode = #tpu.pipeline_mode<synchronous>, transform_indices = @transform_6, window_bounds = array<i64: 1, 32>}, {transform_indices = @transform_7, window_bounds = array<i64: 1, 1, 128>}, {transform_indices = @transform_8, window_bounds = array<i64: 1, 8, 128>}]} {
    %c0 = arith.constant 0 : index
    %c0_0 = arith.constant 0 : index
    %c0_1 = arith.constant 0 : index
    %0 = vector.load %arg3[%c0, %c0_0, %c0_1] : memref<1x128x32xf32, #tpu.memory_space<vmem>>, vector<1x128x32xf32>
    %1 = vector.shape_cast %0 : vector<1x128x32xf32> to vector<128x32xf32>
    %c0_2 = arith.constant 0 : index
    %c0_3 = arith.constant 0 : index
    %2 = vector.load %arg5[%c0_2, %c0_3] : memref<32x32xf32, #tpu.memory_space<vmem>>, vector<32x32xf32>
    %cst = arith.constant dense<0.000000e+00> : vector<128x32xf32>
    %3 = tpu.matmul %1, %2, %cst {dimension_numbers = #tpu.dot_dimension_numbers<[1], [0], [0], [1], [0, 0, 1, 1], [], []>} : vector<128x32xf32>, vector<32x32xf32>, vector<128x32xf32> -> vector<128x32xf32>
    %c0_4 = arith.constant 0 : index
    %c0_5 = arith.constant 0 : index
    %4 = vector.load %arg6[%c0_4, %c0_5] : memref<1x32xf32, #tpu.memory_space<vmem>>, vector<1x32xf32>
    %5 = vector.broadcast %4 : vector<1x32xf32> to vector<128x32xf32>
    %6 = arith.addf %3, %5 : vector<128x32xf32>
    %c0_6 = arith.constant 0 : index
    %c0_7 = arith.constant 0 : index
    %c0_8 = arith.constant 0 : index
    %7 = vector.load %arg4[%c0_6, %c0_7, %c0_8] : memref<1x8x32xf32, #tpu.memory_space<vmem>>, vector<1x8x32xf32>
    %8 = vector.shape_cast %7 : vector<1x8x32xf32> to vector<8x32xf32>
    %c0_9 = arith.constant 0 : index
    %c0_10 = arith.constant 0 : index
    %9 = vector.load %arg7[%c0_9, %c0_10] : memref<32x32xf32, #tpu.memory_space<vmem>>, vector<32x32xf32>
    %cst_11 = arith.constant dense<0.000000e+00> : vector<8x32xf32>
    %10 = tpu.matmul %8, %9, %cst_11 {dimension_numbers = #tpu.dot_dimension_numbers<[1], [0], [0], [1], [0, 0, 1, 1], [], []>} : vector<8x32xf32>, vector<32x32xf32>, vector<8x32xf32> -> vector<8x32xf32>
    %c0_12 = arith.constant 0 : index
    %c0_13 = arith.constant 0 : index
    %11 = vector.load %arg8[%c0_12, %c0_13] : memref<1x32xf32, #tpu.memory_space<vmem>>, vector<1x32xf32>
    %12 = vector.broadcast %11 : vector<1x32xf32> to vector<8x32xf32>
    %13 = arith.addf %10, %12 : vector<8x32xf32>
    %14 = vector.shape_cast %6 : vector<128x32xf32> to vector<1x128x32xf32>
    %15 = vector.shape_cast %13 : vector<8x32xf32> to vector<8x1x32xf32>
    %16 = vector.broadcast %14 : vector<1x128x32xf32> to vector<8x128x32xf32>
    %17 = vector.broadcast %15 : vector<8x1x32xf32> to vector<8x128x32xf32>
    %18 = arith.addf %16, %17 : vector<8x128x32xf32>
    %cst_14 = arith.constant 0.000000e+00 : f32
    %19 = vector.broadcast %cst_14 : f32 to vector<8x128x32xf32>
    %20 = arith.maximumf %18, %19 : vector<8x128x32xf32>
    %c0_15 = arith.constant 0 : index
    %c0_16 = arith.constant 0 : index
    %21 = vector.load %arg9[%c0_15, %c0_16] : memref<1x32xf32, #tpu.memory_space<vmem>>, vector<1x32xf32>
    %22 = vector.shape_cast %21 : vector<1x32xf32> to vector<1x1x32xf32>
    %23 = vector.broadcast %22 : vector<1x1x32xf32> to vector<8x128x32xf32>
    %24 = arith.mulf %20, %23 : vector<8x128x32xf32>
    %cst_17 = arith.constant dense<0.000000e+00> : vector<8x128xf32>
    %25 = vector.multi_reduction <add>, %24, %cst_17 [2] : vector<8x128x32xf32> to vector<8x128xf32>
    %c0_18 = arith.constant 0 : index
    %c0_19 = arith.constant 0 : index
    %c0_20 = arith.constant 0 : index
    %26 = vector.load %arg10[%c0_18, %c0_19, %c0_20] : memref<1x1x128xf32, #tpu.memory_space<vmem>>, vector<1x1x128xf32>
    %27 = vector.shape_cast %26 : vector<1x1x128xf32> to vector<1x128xf32>
    %cst_21 = arith.constant -5.000000e+03 : f32
    %28 = vector.broadcast %cst_21 : f32 to vector<1x128xf32>
    %29 = arith.cmpf olt, %27, %28 : vector<1x128xf32>
    %30 = vector.broadcast %27 : vector<1x128xf32> to vector<8x128xf32>
    %31 = arith.addf %25, %30 : vector<8x128xf32>
    %cst_22 = arith.constant -1.000000e+04 : f32
    %32 = vector.shape_cast %29 : vector<1x128xi1> to vector<1x128xi1>
    %33 = vector.broadcast %32 : vector<1x128xi1> to vector<8x128xi1>
    %34 = vector.broadcast %cst_22 : f32 to vector<8x128xf32>
    %35 = arith.select %33, %34, %31 : vector<8x128xi1>, vector<8x128xf32>
    %36 = arith.negf %35 : vector<8x128xf32>
    %37 = math.exp %36 : vector<8x128xf32>
    %cst_23 = arith.constant 1.000000e+00 : f32
    %38 = vector.broadcast %cst_23 : f32 to vector<8x128xf32>
    %39 = arith.addf %38, %37 : vector<8x128xf32>
    %40 = arith.divf %38, %39 : vector<8x128xf32>
    %c0_24 = arith.constant 0 : index
    %c0_25 = arith.constant 0 : index
    %c0_26 = arith.constant 0 : index
    %41 = vector.load %arg11[%c0_24, %c0_25, %c0_26] : memref<1x8x128xf32, #tpu.memory_space<vmem>>, vector<1x8x128xf32>
    %42 = vector.shape_cast %41 : vector<1x8x128xf32> to vector<8x128xf32>
    %43 = vector.shape_cast %40 : vector<8x128xf32> to vector<1x8x128xf32>
    tpu.vector_store %arg11[%c0_24, %c0_25, %c0_26], %43 {strides = array<i32>} : memref<1x8x128xf32, #tpu.memory_space<vmem>>, vector<1x8x128xf32>,
    return
  }
  func.func @transform_0(%arg0: i32, %arg1: i32, %arg2: i32) -> (i32, i32, i32) {
    %c0_i32 = arith.constant 0 : i32
    %c0_i32_0 = arith.constant 0 : i32
    return %arg0, %arg1, %c0_i32 : i32, i32, i32
  }
  func.func @transform_1(%arg0: i32, %arg1: i32, %arg2: i32) -> (i32, i32, i32) {
    %c0_i32 = arith.constant 0 : i32
    %c0_i32_0 = arith.constant 0 : i32
    return %arg0, %arg2, %c0_i32 : i32, i32, i32
  }
  func.func @transform_2(%arg0: i32, %arg1: i32, %arg2: i32) -> (i32, i32) {
    %c0_i32 = arith.constant 0 : i32
    %c0_i32_0 = arith.constant 0 : i32
    %c0_i32_1 = arith.constant 0 : i32
    return %c0_i32, %c0_i32_0 : i32, i32
  }
  func.func @transform_3(%arg0: i32, %arg1: i32, %arg2: i32) -> (i32, i32) {
    %c0_i32 = arith.constant 0 : i32
    %c0_i32_0 = arith.constant 0 : i32
    %c0_i32_1 = arith.constant 0 : i32
    return %c0_i32, %c0_i32_0 : i32, i32
  }
  func.func @transform_4(%arg0: i32, %arg1: i32, %arg2: i32) -> (i32, i32) {
    %c0_i32 = arith.constant 0 : i32
    %c0_i32_0 = arith.constant 0 : i32
    %c0_i32_1 = arith.constant 0 : i32
    return %c0_i32, %c0_i32_0 : i32, i32
  }
  func.func @transform_5(%arg0: i32, %arg1: i32, %arg2: i32) -> (i32, i32) {
    %c0_i32 = arith.constant 0 : i32
    %c0_i32_0 = arith.constant 0 : i32
    %c0_i32_1 = arith.constant 0 : i32
    return %c0_i32, %c0_i32_0 : i32, i32
  }
  func.func @transform_6(%arg0: i32, %arg1: i32, %arg2: i32) -> (i32, i32) {
    %c0_i32 = arith.constant 0 : i32
    %c0_i32_0 = arith.constant 0 : i32
    %c0_i32_1 = arith.constant 0 : i32
    return %c0_i32, %c0_i32_0 : i32, i32
  }
  func.func @transform_7(%arg0: i32, %arg1: i32, %arg2: i32) -> (i32, i32, i32) {
    %c0_i32 = arith.constant 0 : i32
    %c0_i32_0 = arith.constant 0 : i32
    return %arg0, %c0_i32, %arg1 : i32, i32, i32
  }
  func.func @transform_8(%arg0: i32, %arg1: i32, %arg2: i32) -> (i32, i32, i32) {
    %c0_i32 = arith.constant 0 : i32
    return %arg0, %arg2, %arg1 : i32, i32, i32
  }
}

</mosaic_0001>

<llo_original>
// kernel: tpu_custom_call.1
$region0: #{tpu_custom_call.1}
  #allocation0 [shape = 'u32[]', space=smem, size = 0x4, offset = 0x4, fixed_abs, tag = 'smem constant byte address 0x4 - core index']
  #allocation1 [shape = 'u32[144,128]{1,0:T(1,128)}', space=vmem, size = 0x12000, scoped, tag = 'internal scratch']
  %s0 = inlined_call_operand.vmem [shape: f32[2,128,32], index: 0, kind: input, shape index: {}]
  %s1 = inlined_call_operand.vmem [shape: f32[2,8,32], index: 1, kind: input, shape index: {}]
  %s2 = inlined_call_operand.vmem [shape: f32[32,32], index: 2, kind: input, shape index: {}]
  %s3 = inlined_call_operand.vmem [shape: f32[1,32], index: 3, kind: input, shape index: {}]
  %s4 = inlined_call_operand.vmem [shape: f32[32,32], index: 4, kind: input, shape index: {}]
  %s5 = inlined_call_operand.vmem [shape: f32[1,32], index: 5, kind: input, shape index: {}]
  %s6 = inlined_call_operand.vmem [shape: f32[1,32], index: 6, kind: input, shape index: {}]
  %s7 = inlined_call_operand.vmem [shape: f32[2,1,128], index: 7, kind: input, shape index: {}]
  %s8 = inlined_call_operand.hbm [shape: f32[2,8,128], index: 8, kind: output, shape index: {}]
  %s9 = sld [smem:[#allocation0]]
  $region65: #{tpu_custom_call.1} parent=0
    _
  %s11 = ssub.s32 1, %s9
  %s12 = scalar_select 0, %s11, %s9
  $region1: #{tpu_custom_call.1} parent=0
    #allocation2 [shape = 'u8[8192]{0}', space=vmem, size = 0x2000, scoped, tag = 'output window, operand 0']
    #allocation3 [shape = 's32[2]{0}', space=sflag, size = 0x8, scoped, tag = 'scoped memory for tpu_custom_call.1']
    %13 = vsyncpa [#allocation3], 0
    %s14 = scalar_lea.sflag [#allocation3], 1
    %15 = vsyncpa %s14, 0
    loop: start=0, step=1, limit=4
    $region2: #{tpu_custom_call.1} parent=1 // loop_pre_header
      _
    $region3: #{tpu_custom_call.1} parent=1 // loop_header
      %s17 = sphi 0, %s21
      %p18 = scmp.ge.s32.totalorder %s17, 4
      %s24 = sphi 0, %s43
      %s25 = sphi 0, %s39
      %s26 = sphi 0, %s35
      %s27 = sphi 0, %s24
      %s28 = sphi 0, %s25
      %s29 = sphi 0, %s26
      %s30 = sphi 0, %s27
      %s31 = sphi 0, %s28
      %s32 = sphi 0, %s29
      %s48 = sphi 0, %s50
      %s51 = sphi 0, %s48
      %s52 = sphi 0, %s51
      %s68 = sphi 0, %s52
      %s76 = sphi 0, %s78
      %s79 = sphi 0, %s76
      %s80 = sphi 0, %s79
      %s96 = sphi 0, %s80
      %s100 = sphi 0, %s100
      %s102 = sphi 0, %s100
      %s103 = sphi 0, %s102
      %s117 = sphi 0, %s103
      %s121 = sphi 0, %s121
      %s123 = sphi 0, %s121
      %s124 = sphi 0, %s123
      %s138 = sphi 0, %s124
      %s142 = sphi 0, %s142
      %s144 = sphi 0, %s142
      %s145 = sphi 0, %s144
      %s159 = sphi 0, %s145
      %s163 = sphi 0, %s163
      %s165 = sphi 0, %s163
      %s166 = sphi 0, %s165
      %s180 = sphi 0, %s166
      %s184 = sphi 0, %s184
      %s186 = sphi 0, %s184
      %s187 = sphi 0, %s186
      %s201 = sphi 0, %s187
      %s209 = sphi 0, %s211
      %s212 = sphi 0, %s209
      %s213 = sphi 0, %s212
      %s229 = sphi 0, %s213
      %s239 = sphi 0, %s241
      %s242 = sphi 0, %s239
      %s243 = sphi 0, %s242
      %s259 = sphi 0, %s243
    $region4: #{tpu_custom_call.1} parent=1 // loop_header_branch
      %20 = sbr.rel (%p18) target = $region8
    $region5: #{tpu_custom_call.1} parent=1 // loop_body
      %s22 = ssub.s32 %s17, 1
      %s23 = ssub.s32 %s17, 2
      %s33 = sadd.s32 1, %s26
      %p34 = scmp.ge.s32.totalorder %s33, 1
      %s35 = scalar_select %p34, 0, %s33
      %s36 = sadd.s32 1, %s25
      %s37 = scalar_select %p34, %s36, %s25
      %p38 = scmp.ge.s32.totalorder %s37, 1
      %s39 = scalar_select %p38, 0, %s37
      %s40 = sadd.s32 1, %s24
      %s41 = scalar_select %p38, %s40, %s24
      %p42 = scmp.ge.s32.totalorder %s41, 2
      %s43 = scalar_select %p42, 0, %s41
      %s44 = ssub.s32 %s24, %s43
      %s45 = ssub.s32 %s25, %s39
      %s46 = sor.u32 %s44, %s45
      %p47 = scmp.eq.s32.totalorder %s46, 0
      %s49 = sadd.s32 %s48, 1
      %s50 = scalar_select %p47, %s48, %s49
      %p53 = pneg %p47
      %p54 = scmp.eq.s32.totalorder %s17, 1
      %p55 = por %p53, %p54
      %p56 = scmp.ne.s32.totalorder %s48, %s51
      %p57 = scmp.eq.s32.totalorder %s17, 0
      %p58 = por %p56, %p57
      %p59 = scmp.ne.s32.totalorder %s48, %s51
      %p60 = scmp.eq.s32.totalorder %s22, 1
      %p61 = por %p59, %p60
      %p62 = scmp.ne.s32.totalorder %s51, %s52
      %p63 = scmp.eq.s32.totalorder %s22, 0
      %p64 = por %p62, %p63
      %p65 = scmp.ne.s32.totalorder %s51, %s52
      %p66 = scmp.eq.s32.totalorder %s23, 1
      %p67 = por %p65, %p66
      %p69 = scmp.ne.s32.totalorder %s52, %s68
      %p70 = scmp.eq.s32.totalorder %s23, 0
      %p71 = por %p69, %p70
      %s72 = ssub.s32 %s24, %s43
      %s73 = ssub.s32 %s26, %s35
      %s74 = sor.u32 %s72, %s73
      %p75 = scmp.eq.s32.totalorder %s74, 0
      %s77 = sadd.s32 %s76, 1
      %s78 = scalar_select %p75, %s76, %s77
      %p81 = pneg %p75
      %p82 = scmp.eq.s32.totalorder %s17, 1
      %p83 = por %p81, %p82
      %p84 = scmp.ne.s32.totalorder %s76, %s79
      %p85 = scmp.eq.s32.totalorder %s17, 0
      %p86 = por %p84, %p85
      %p87 = scmp.ne.s32.totalorder %s76, %s79
      %p88 = scmp.eq.s32.totalorder %s22, 1
      %p89 = por %p87, %p88
      %p90 = scmp.ne.s32.totalorder %s79, %s80
      %p91 = scmp.eq.s32.totalorder %s22, 0
      %p92 = por %p90, %p91
      %p93 = scmp.ne.s32.totalorder %s79, %s80
      %p94 = scmp.eq.s32.totalorder %s23, 1
      %p95 = por %p93, %p94
      %p97 = scmp.ne.s32.totalorder %s80, %s96
      %p98 = scmp.eq.s32.totalorder %s23, 0
      %p99 = por %p97, %p98
      %s101 = sadd.s32 %s100, 1
      %p104 = scmp.eq.s32.totalorder %s17, 1
      %p105 = scmp.ne.s32.totalorder %s100, %s102
      %p106 = scmp.eq.s32.totalorder %s17, 0
      %p107 = por %p105, %p106
      %p108 = scmp.ne.s32.totalorder %s100, %s102
      %p109 = scmp.eq.s32.totalorder %s22, 1
      %p110 = por %p108, %p109
      %p111 = scmp.ne.s32.totalorder %s102, %s103
      %p112 = scmp.eq.s32.totalorder %s22, 0
      %p113 = por %p111, %p112
      %p114 = scmp.ne.s32.totalorder %s102, %s103
      %p115 = scmp.eq.s32.totalorder %s23, 1
      %p116 = por %p114, %p115
      %p118 = scmp.ne.s32.totalorder %s103, %s117
      %p119 = scmp.eq.s32.totalorder %s23, 0
      %p120 = por %p118, %p119
      %s122 = sadd.s32 %s121, 1
      %p125 = scmp.eq.s32.totalorder %s17, 1
      %p126 = scmp.ne.s32.totalorder %s121, %s123
      %p127 = scmp.eq.s32.totalorder %s17, 0
      %p128 = por %p126, %p127
      %p129 = scmp.ne.s32.totalorder %s121, %s123
      %p130 = scmp.eq.s32.totalorder %s22, 1
      %p131 = por %p129, %p130
      %p132 = scmp.ne.s32.totalorder %s123, %s124
      %p133 = scmp.eq.s32.totalorder %s22, 0
      %p134 = por %p132, %p133
      %p135 = scmp.ne.s32.totalorder %s123, %s124
      %p136 = scmp.eq.s32.totalorder %s23, 1
      %p137 = por %p135, %p136
      %p139 = scmp.ne.s32.totalorder %s124, %s138
      %p140 = scmp.eq.s32.totalorder %s23, 0
      %p141 = por %p139, %p140
      %s143 = sadd.s32 %s142, 1
      %p146 = scmp.eq.s32.totalorder %s17, 1
      %p147 = scmp.ne.s32.totalorder %s142, %s144
      %p148 = scmp.eq.s32.totalorder %s17, 0
      %p149 = por %p147, %p148
      %p150 = scmp.ne.s32.totalorder %s142, %s144
      %p151 = scmp.eq.s32.totalorder %s22, 1
      %p152 = por %p150, %p151
      %p153 = scmp.ne.s32.totalorder %s144, %s145
      %p154 = scmp.eq.s32.totalorder %s22, 0
      %p155 = por %p153, %p154
      %p156 = scmp.ne.s32.totalorder %s144, %s145
      %p157 = scmp.eq.s32.totalorder %s23, 1
      %p158 = por %p156, %p157
      %p160 = scmp.ne.s32.totalorder %s145, %s159
      %p161 = scmp.eq.s32.totalorder %s23, 0
      %p162 = por %p160, %p161
      %s164 = sadd.s32 %s163, 1
      %p167 = scmp.eq.s32.totalorder %s17, 1
      %p168 = scmp.ne.s32.totalorder %s163, %s165
      %p169 = scmp.eq.s32.totalorder %s17, 0
      %p170 = por %p168, %p169
      %p171 = scmp.ne.s32.totalorder %s163, %s165
      %p172 = scmp.eq.s32.totalorder %s22, 1
      %p173 = por %p171, %p172
      %p174 = scmp.ne.s32.totalorder %s165, %s166
      %p175 = scmp.eq.s32.totalorder %s22, 0
      %p176 = por %p174, %p175
      %p177 = scmp.ne.s32.totalorder %s165, %s166
      %p178 = scmp.eq.s32.totalorder %s23, 1
      %p179 = por %p177, %p178
      %p181 = scmp.ne.s32.totalorder %s166, %s180
      %p182 = scmp.eq.s32.totalorder %s23, 0
      %p183 = por %p181, %p182
      %s185 = sadd.s32 %s184, 1
      %p188 = scmp.eq.s32.totalorder %s17, 1
      %p189 = scmp.ne.s32.totalorder %s184, %s186
      %p190 = scmp.eq.s32.totalorder %s17, 0
      %p191 = por %p189, %p190
      %p192 = scmp.ne.s32.totalorder %s184, %s186
      %p193 = scmp.eq.s32.totalorder %s22, 1
      %p194 = por %p192, %p193
      %p195 = scmp.ne.s32.totalorder %s186, %s187
      %p196 = scmp.eq.s32.totalorder %s22, 0
      %p197 = por %p195, %p196
      %p198 = scmp.ne.s32.totalorder %s186, %s187
      %p199 = scmp.eq.s32.totalorder %s23, 1
      %p200 = por %p198, %p199
      %p202 = scmp.ne.s32.totalorder %s187, %s201
      %p203 = scmp.eq.s32.totalorder %s23, 0
      %p204 = por %p202, %p203
      %s205 = ssub.s32 %s24, %s43
      %s206 = ssub.s32 %s25, %s39
      %s207 = sor.u32 %s205, %s206
      %p208 = scmp.eq.s32.totalorder %s207, 0
      %s210 = sadd.s32 %s209, 1
      %s211 = scalar_select %p208, %s209, %s210
      %p214 = pneg %p208
      %p215 = scmp.eq.s32.totalorder %s17, 1
      %p216 = por %p214, %p215
      %p217 = scmp.ne.s32.totalorder %s209, %s212
      %p218 = scmp.eq.s32.totalorder %s17, 0
      %p219 = por %p217, %p218
      %p220 = scmp.ne.s32.totalorder %s209, %s212
      %p221 = scmp.eq.s32.totalorder %s22, 1
      %p222 = por %p220, %p221
      %p223 = scmp.ne.s32.totalorder %s212, %s213
      %p224 = scmp.eq.s32.totalorder %s22, 0
      %p225 = por %p223, %p224
      %p226 = scmp.ne.s32.totalorder %s212, %s213
      %p227 = scmp.eq.s32.totalorder %s23, 1
      %p228 = por %p226, %p227
      %p230 = scmp.ne.s32.totalorder %s213, %s229
      %p231 = scmp.eq.s32.totalorder %s23, 0
      %p232 = por %p230, %p231
      %s233 = ssub.s32 %s24, %s43
      %s234 = ssub.s32 %s26, %s35
      %s235 = sor.u32 %s233, %s234
      %s236 = ssub.s32 %s25, %s39
      %s237 = sor.u32 %s235, %s236
      %p238 = scmp.eq.s32.totalorder %s237, 0
      %s240 = sadd.s32 %s239, 1
      %s241 = scalar_select %p238, %s239, %s240
      %p244 = pneg %p238
      %p245 = scmp.eq.s32.totalorder %s17, 1
      %p246 = por %p244, %p245
      %p247 = scmp.ne.s32.totalorder %s239, %s242
      %p248 = scmp.eq.s32.totalorder %s17, 0
      %p249 = por %p247, %p248
      %p250 = scmp.ne.s32.totalorder %s239, %s242
      %p251 = scmp.eq.s32.totalorder %s22, 1
      %p252 = por %p250, %p251
      %p253 = scmp.ne.s32.totalorder %s242, %s243
      %p254 = scmp.eq.s32.totalorder %s22, 0
      %p255 = por %p253, %p254
      %p256 = scmp.ne.s32.totalorder %s242, %s243
      %p257 = scmp.eq.s32.totalorder %s23, 1
      %p258 = por %p256, %p257
      %p260 = scmp.ne.s32.totalorder %s243, %s259
      %p261 = scmp.eq.s32.totalorder %s23, 0
      %p262 = por %p260, %p261
      %p263 = scmp.le.s32.totalorder 1, %s17
      %p264 = scmp.lt.s32.totalorder %s17, 3
      %p265 = pnand %p263, %p264
      %p266 = pneg %p265
      // Predicated region
      $region9: #{tpu_custom_call.1} parent=5 // pred_check
        _
      $region10: #{tpu_custom_call.1} parent=5 // pred_check_branch
        %268 = sbr.rel (%p265) target = $region12
      $region11: #{tpu_custom_call.1} parent=5 // pred_region
        %s269 = ssub.s32 %s17, 1
        // Predicated region
        $region13: #{tpu_custom_call.1} parent=11 // pred_check
          %p270 = pneg %p113
        $region14: #{tpu_custom_call.1} parent=11 // pred_check_branch
          %272 = sbr.rel (%p270) target = $region16
        $region15: #{tpu_custom_call.1} parent=11 // pred_region
          _
        $region16: #{tpu_custom_call.1} parent=11 // pred_fallthru
          _
        // Predicated region
        $region17: #{tpu_custom_call.1} parent=11 // pred_check
          %p273 = pneg %p134
        $region18: #{tpu_custom_call.1} parent=11 // pred_check_branch
          %275 = sbr.rel (%p273) target = $region20
        $region19: #{tpu_custom_call.1} parent=11 // pred_region
          _
        $region20: #{tpu_custom_call.1} parent=11 // pred_fallthru
          _
        // Predicated region
        $region21: #{tpu_custom_call.1} parent=11 // pred_check
          %p276 = pneg %p155
        $region22: #{tpu_custom_call.1} parent=11 // pred_check_branch
          %278 = sbr.rel (%p276) target = $region24
        $region23: #{tpu_custom_call.1} parent=11 // pred_region
          _
        $region24: #{tpu_custom_call.1} parent=11 // pred_fallthru
          _
        // Predicated region
        $region25: #{tpu_custom_call.1} parent=11 // pred_check
          %p279 = pneg %p176
        $region26: #{tpu_custom_call.1} parent=11 // pred_check_branch
          %281 = sbr.rel (%p279) target = $region28
        $region27: #{tpu_custom_call.1} parent=11 // pred_region
          _
        $region28: #{tpu_custom_call.1} parent=11 // pred_fallthru
          _
        // Predicated region
        $region29: #{tpu_custom_call.1} parent=11 // pred_check
          %p282 = pneg %p197
        $region30: #{tpu_custom_call.1} parent=11 // pred_check_branch
          %284 = sbr.rel (%p282) target = $region32
        $region31: #{tpu_custom_call.1} parent=11 // pred_region
          _
        $region32: #{tpu_custom_call.1} parent=11 // pred_fallthru
          _
      $region12: #{tpu_custom_call.1} parent=5 // pred_fallthru
        _
      %p285 = scmp.lt.s32.totalorder %s17, 2
      // Predicated region
      $region33: #{tpu_custom_call.1} parent=5 // pred_check
        %p286 = pneg %p285
      $region34: #{tpu_custom_call.1} parent=5 // pred_check_branch
        %288 = sbr.rel (%p286) target = $region36
      $region35: #{tpu_custom_call.1} parent=5 // pred_region
        // Predicated region
        $region37: #{tpu_custom_call.1} parent=35 // pred_check
          %p289 = pneg %p58
        $region38: #{tpu_custom_call.1} parent=35 // pred_check_branch
          %291 = sbr.rel (%p289) target = $region40
        $region39: #{tpu_custom_call.1} parent=35 // pred_region
          %s292 = smul.u32 16, %s25
          %p293 = scmp.lt.s32.totalorder %s24, 1
          %s294 = scalar_select %p293, %s24, 1
          %p295 = scmp.lt.s32.totalorder %s292, 15
          %s296 = scalar_select %p295, %s292, 15
          %s297 = smul.addr %s294, 16
          %s298 = sadd.s32 %s296, %s297
          %s299 = smul.addr %s298, 8
          %s300 = scalar_lea.vmem %s0, %s299
          %s301 = smul.u32 16, %s25
        $region40: #{tpu_custom_call.1} parent=35 // pred_fallthru
          _
        // Predicated region
        $region41: #{tpu_custom_call.1} parent=35 // pred_check
          %p302 = pneg %p86
        $region42: #{tpu_custom_call.1} parent=35 // pred_check_branch
          %304 = sbr.rel (%p302) target = $region44
        $region43: #{tpu_custom_call.1} parent=35 // pred_region
          %p305 = scmp.lt.s32.totalorder %s24, 1
          %s306 = scalar_select %p305, %s24, 1
          %p307 = scmp.lt.s32.totalorder %s26, 0
          %s308 = scalar_select %p307, %s26, 0
          %s309 = sadd.s32 %s308, %s306
          %s310 = smul.addr %s309, 8
          %s311 = scalar_lea.vmem %s1, %s310
        $region44: #{tpu_custom_call.1} parent=35 // pred_fallthru
          _
        // Predicated region
        $region45: #{tpu_custom_call.1} parent=35 // pred_check
          %p312 = pneg %p219
        $region46: #{tpu_custom_call.1} parent=35 // pred_check_branch
          %314 = sbr.rel (%p312) target = $region48
        $region47: #{tpu_custom_call.1} parent=35 // pred_region
          %p315 = scmp.lt.s32.totalorder %s24, 1
          %s316 = scalar_select %p315, %s24, 1
          %p317 = scmp.lt.s32.totalorder %s25, 0
          %s318 = scalar_select %p317, %s25, 0
          %s319 = sadd.s32 %s318, %s316
          %s320 = scalar_lea.vmem %s7, %s319
        $region48: #{tpu_custom_call.1} parent=35 // pred_fallthru
          _
      $region36: #{tpu_custom_call.1} parent=5 // pred_fallthru
        _
      %p321 = scmp.le.s32.totalorder 1, %s17
      %p322 = scmp.lt.s32.totalorder %s17, 3
      %p323 = pnand %p321, %p322
      %p324 = pneg %p323
      // Predicated region
      $region49: #{tpu_custom_call.1} parent=5 // pred_check
        _
      $region50: #{tpu_custom_call.1} parent=5 // pred_check_branch
        %326 = sbr.rel (%p323) target = $region52
      $region51: #{tpu_custom_call.1} parent=5 // pred_region
        %s327 = ssub.s32 %s17, 1
        %s328 = smul.u32 16, %s28
        %p329 = scmp.lt.s32.totalorder %s27, 1
        %s330 = scalar_select %p329, %s27, 1
        %p331 = scmp.lt.s32.totalorder %s328, 15
        %s332 = scalar_select %p331, %s328, 15
        %s333 = smul.addr %s330, 16
        %s334 = sadd.s32 %s332, %s333
        %s335 = smul.addr %s334, 8
        %s336 = scalar_lea.vmem %s0, %s335
        %p337 = pneg %p64
        %p338 = pneg %p61
        %p339 = scmp.lt.s32.totalorder %s27, 1
        %s340 = scalar_select %p339, %s27, 1
        %p341 = scmp.lt.s32.totalorder %s29, 0
        %s342 = scalar_select %p341, %s29, 0
        %s343 = sadd.s32 %s342, %s340
        %s344 = smul.addr %s343, 8
        %s345 = scalar_lea.vmem %s1, %s344
        %p346 = pneg %p92
        %p347 = pneg %p89
        %p348 = pneg %p113
        %p349 = pneg %p110
        %p350 = pneg %p134
        %p351 = pneg %p131
        %p352 = pneg %p155
        %p353 = pneg %p152
        %p354 = pneg %p176
        %p355 = pneg %p173
        %p356 = pneg %p197
        %p357 = pneg %p194
        %p358 = scmp.lt.s32.totalorder %s27, 1
        %s359 = scalar_select %p358, %s27, 1
        %p360 = scmp.lt.s32.totalorder %s28, 0
        %s361 = scalar_select %p360, %s28, 0
        %s362 = sadd.s32 %s361, %s359
        %s363 = scalar_lea.vmem %s7, %s362
        %p364 = pneg %p225
        %p365 = pneg %p222
        %p366 = pneg %p255
        %p367 = pneg %p252
        %s368 = sand.u32 %s242, 1
        %s369 = scalar_lea.sflag [#allocation3], %s368
        %s370 = sand.u32 %s242, 1
        %s371 = smul.addr %s370, 8
        %s372 = scalar_lea.vmem [#allocation2], %s371
        %s373 = smul.u32 16, %s28
        %p374 = scmp.lt.s32.totalorder %s27, 1
        %s375 = scalar_select %p374, %s27, 1
        %p376 = scmp.lt.s32.totalorder %s373, 15
        %s377 = scalar_select %p376, %s373, 15
        %s378 = smul.addr %s375, 16
        %s379 = sadd.s32 %s377, %s378
        %s380 = smul.addr %s379, 8
        %s381 = scalar_lea.vmem %s0, %s380
        %s382 = smul.u32 16, %s28
        %p383 = scmp.lt.s32.totalorder %s27, 1
        %s384 = scalar_select %p383, %s27, 1
        %p385 = scmp.lt.s32.totalorder %s29, 0
        %s386 = scalar_select %p385, %s29, 0
        %s387 = sadd.s32 %s386, %s384
        %s388 = smul.addr %s387, 8
        %s389 = scalar_lea.vmem %s1, %s388
        %p390 = scmp.lt.s32.totalorder %s27, 1
        %s391 = scalar_select %p390, %s27, 1
        %p392 = scmp.lt.s32.totalorder %s28, 0
        %s393 = scalar_select %p392, %s28, 0
        %s394 = sadd.s32 %s393, %s391
        %s395 = scalar_lea.vmem %s7, %s394
        %v396 = vld [vmem:[%s381] sm:$0xff]
        %v397 = vld [vmem:[%s381 + $0x8] sm:$0xff]
        %v398 = vld [vmem:[%s381 + $0x10] sm:$0xff]
        %v399 = vld [vmem:[%s381 + $0x18] sm:$0xff]
        %v400 = vld [vmem:[%s381 + $0x20] sm:$0xff]
        %v401 = vld [vmem:[%s381 + $0x28] sm:$0xff]
        %v402 = vld [vmem:[%s381 + $0x30] sm:$0xff]
        %v403 = vld [vmem:[%s381 + $0x38] sm:$0xff]
        %v404 = vld [vmem:[%s381 + $0x40] sm:$0xff]
        %v405 = vld [vmem:[%s381 + $0x48] sm:$0xff]
        %v406 = vld [vmem:[%s381 + $0x50] sm:$0xff]
        %v407 = vld [vmem:[%s381 + $0x58] sm:$0xff]
        %v408 = vld [vmem:[%s381 + $0x60] sm:$0xff]
        %v409 = vld [vmem:[%s381 + $0x68] sm:$0xff]
        %v410 = vld [vmem:[%s381 + $0x70] sm:$0xff]
        %v411 = vld [vmem:[%s381 + $0x78] sm:$0xff]
        %v412 = vld [vmem:[%s2] sm:$0xff]
        %v413 = vld [vmem:[%s2 + $0x8] sm:$0xff]
        %v414 = vld [vmem:[%s2 + $0x10] sm:$0xff]
        %v415 = vld [vmem:[%s2 + $0x18] sm:$0xff]
        %v416 = vld [vmem:[%s3] sm:$0x1]
        %v418 = vlaneseq
        %v419 = vshrl.u32 %v418, 7
        %v420 = vsub.s32 0, %v419
        %v421 = vrot.slane %v416, %v420
        %vm423 = vcmask 261120
        %v425 = vsel %vm423, %v396, 0
        %v428 = vsel %vm423, %v397, 0
        %v431 = vsel %vm423, %v398, 0
        %v434 = vsel %vm423, %v399, 0
        %v437 = vsel %vm423, %v400, 0
        %v440 = vsel %vm423, %v401, 0
        %v443 = vsel %vm423, %v402, 0
        %v446 = vsel %vm423, %v403, 0
        %v449 = vsel %vm423, %v404, 0
        %v452 = vsel %vm423, %v405, 0
        %v455 = vsel %vm423, %v406, 0
        %v458 = vsel %vm423, %v407, 0
        %v461 = vsel %vm423, %v408, 0
        %v464 = vsel %vm423, %v409, 0
        %v467 = vsel %vm423, %v410, 0
        %v470 = vsel %vm423, %v411, 0
        %472 = vmatprep.subr.mxu0 0.0
        %473 = vmatpush1.msra.mxu0 %v412
        %474 = vmatprep.subr.mxu0 0.0
        %475 = vmatpush1.msra.mxu0 %v413
        %476 = vmatprep.subr.mxu0 0.0
        %477 = vmatpush1.msra.mxu0 %v414
        %478 = vmatprep.subr.mxu0 0.0
        %479 = vmatpush1.msra.mxu0 %v415
        %480 = vmatprep.subr.mxu0 0.0
        %481 = vmatpush1.msra.mxu0 0.0
        %482 = vmatprep.subr.mxu0 0.0
        %483 = vmatpush1.msra.mxu0 0.0
        %484 = vmatprep.subr.mxu0 0.0
        %485 = vmatpush1.msra.mxu0 0.0
        %486 = vmatprep.subr.mxu0 0.0
        %487 = vmatpush1.msra.mxu0 0.0
        %488 = vmatprep.subr.mxu0 0.0
        %489 = vmatpush1.msra.mxu0 0.0
        %490 = vmatprep.subr.mxu0 0.0
        %491 = vmatpush1.msra.mxu0 0.0
        %492 = vmatprep.subr.mxu0 0.0
        %493 = vmatpush1.msra.mxu0 0.0
        %494 = vmatprep.subr.mxu0 0.0
        %495 = vmatpush1.msra.mxu0 0.0
        %496 = vmatprep.subr.mxu0 0.0
        %497 = vmatpush1.msra.mxu0 0.0
        %498 = vmatprep.subr.mxu0 0.0
        %499 = vmatpush1.msra.mxu0 0.0
        %500 = vmatprep.subr.mxu0 0.0
        %501 = vmatpush1.msra.mxu0 0.0
        %502 = vmatprep.subr.mxu0 0.0
        %503 = vmatpush1.msra.mxu0 0.0
        %504 = vmatprep.subr.mxu0 0.0
        %505 = vmatpush1.msra.mxu0 0.0
        %506 = vmatprep.subr.mxu0 0.0
        %507 = vmatpush1.msra.mxu0 0.0
        %508 = vmatprep.subr.mxu0 0.0
        %509 = vmatpush1.msra.mxu0 0.0
        %510 = vmatprep.subr.mxu0 0.0
        %511 = vmatpush1.msra.mxu0 0.0
        %512 = vmatprep.subr.mxu0 0.0
        %513 = vmatpush1.msra.mxu0 0.0
        %514 = vmatprep.subr.mxu0 0.0
        %515 = vmatpush1.msra.mxu0 0.0
        %516 = vmatprep.subr.mxu0 0.0
        %517 = vmatpush1.msra.mxu0 0.0
        %518 = vmatprep.subr.mxu0 0.0
        %519 = vmatpush1.msra.mxu0 0.0
        %520 = vmatprep.subr.mxu0 0.0
        %521 = vmatpush1.msra.mxu0 0.0
        %522 = vmatprep.subr.mxu0 0.0
        %523 = vmatpush1.msra.mxu0 0.0
        %524 = vmatprep.subr.mxu0 0.0
        %525 = vmatpush1.msra.mxu0 0.0
        %526 = vmatprep.subr.mxu0 0.0
        %527 = vmatpush1.msra.mxu0 0.0
        %528 = vmatprep.subr.mxu0 0.0
        %529 = vmatpush1.msra.mxu0 0.0
        %530 = vmatprep.subr.mxu0 0.0
        %531 = vmatpush1.msra.mxu0 0.0
        %532 = vmatprep.subr.mxu0 0.0
        %533 = vmatpush1.msra.mxu0 0.0
        %534 = vmatprep.subr.mxu0 0.0
        %535 = vmatpush1.msra.mxu0 0.0
        %536 = vmatprep.mubr.f32.mxu0 0.0
        %537 = vmatmul.mubr.f32.gmra.mrb[0].mxu0 %v425
        %v538 = vpop.f32.mrb[0].mxu0
        %v539 = vadd.f32 %v421, %v538
        %v540 = vpop.f32.mrb[0].mxu0
        %541 = vmatprep.mubr.f32.mxu0 0.0
        %542 = vmatmul.mubr.f32.gmra.mrb[0].mxu0 %v428
        %v543 = vpop.f32.mrb[0].mxu0
        %v544 = vadd.f32 %v421, %v543
        %v545 = vpop.f32.mrb[0].mxu0
        %546 = vmatprep.mubr.f32.mxu0 0.0
        %547 = vmatmul.mubr.f32.gmra.mrb[0].mxu0 %v431
        %v548 = vpop.f32.mrb[0].mxu0
        %v549 = vadd.f32 %v421, %v548
        %v550 = vpop.f32.mrb[0].mxu0
        %551 = vmatprep.mubr.f32.mxu0 0.0
        %552 = vmatmul.mubr.f32.gmra.mrb[0].mxu0 %v434
        %v553 = vpop.f32.mrb[0].mxu0
        %v554 = vadd.f32 %v421, %v553
        %v555 = vpop.f32.mrb[0].mxu0
        %556 = vmatprep.mubr.f32.mxu0 0.0
        %557 = vmatmul.mubr.f32.gmra.mrb[0].mxu0 %v437
        %v558 = vpop.f32.mrb[0].mxu0
        %v559 = vadd.f32 %v421, %v558
        %v560 = vpop.f32.mrb[0].mxu0
        %561 = vmatprep.mubr.f32.mxu0 0.0
        %562 = vmatmul.mubr.f32.gmra.mrb[0].mxu0 %v440
        %v563 = vpop.f32.mrb[0].mxu0
        %v564 = vadd.f32 %v421, %v563
        %v565 = vpop.f32.mrb[0].mxu0
        %566 = vmatprep.mubr.f32.mxu0 0.0
        %567 = vmatmul.mubr.f32.gmra.mrb[0].mxu0 %v443
        %v568 = vpop.f32.mrb[0].mxu0
        %v569 = vadd.f32 %v421, %v568
        %v570 = vpop.f32.mrb[0].mxu0
        %571 = vmatprep.mubr.f32.mxu0 0.0
        %572 = vmatmul.mubr.f32.gmra.mrb[0].mxu0 %v446
        %v573 = vpop.f32.mrb[0].mxu0
        %v574 = vadd.f32 %v421, %v573
        %v575 = vpop.f32.mrb[0].mxu0
        %576 = vmatprep.mubr.f32.mxu0 0.0
        %577 = vmatmul.mubr.f32.gmra.mrb[0].mxu0 %v449
        %v578 = vpop.f32.mrb[0].mxu0
        %v579 = vadd.f32 %v421, %v578
        %v580 = vpop.f32.mrb[0].mxu0
        %581 = vmatprep.mubr.f32.mxu0 0.0
        %582 = vmatmul.mubr.f32.gmra.mrb[0].mxu0 %v452
        %v583 = vpop.f32.mrb[0].mxu0
        %v584 = vadd.f32 %v421, %v583
        %v585 = vpop.f32.mrb[0].mxu0
        %586 = vmatprep.mubr.f32.mxu0 0.0
        %587 = vmatmul.mubr.f32.gmra.mrb[0].mxu0 %v455
        %v588 = vpop.f32.mrb[0].mxu0
        %v589 = vadd.f32 %v421, %v588
        %v590 = vpop.f32.mrb[0].mxu0
        %591 = vmatprep.mubr.f32.mxu0 0.0
        %592 = vmatmul.mubr.f32.gmra.mrb[0].mxu0 %v458
        %v593 = vpop.f32.mrb[0].mxu0
        %v594 = vadd.f32 %v421, %v593
        %v595 = vpop.f32.mrb[0].mxu0
        %596 = vmatprep.mubr.f32.mxu0 0.0
        %597 = vmatmul.mubr.f32.gmra.mrb[0].mxu0 %v461
        %v598 = vpop.f32.mrb[0].mxu0
        %v599 = vadd.f32 %v421, %v598
        %v600 = vpop.f32.mrb[0].mxu0
        %601 = vmatprep.mubr.f32.mxu0 0.0
        %602 = vmatmul.mubr.f32.gmra.mrb[0].mxu0 %v464
        %v603 = vpop.f32.mrb[0].mxu0
        %v604 = vadd.f32 %v421, %v603
        %v605 = vpop.f32.mrb[0].mxu0
        %606 = vmatprep.mubr.f32.mxu0 0.0
        %607 = vmatmul.mubr.f32.gmra.mrb[0].mxu0 %v467
        %v608 = vpop.f32.mrb[0].mxu0
        %v609 = vadd.f32 %v421, %v608
        %v610 = vpop.f32.mrb[0].mxu0
        %611 = vmatprep.mubr.f32.mxu0 0.0
        %612 = vmatmul.mubr.f32.gmra.mrb[0].mxu0 %v470
        %v613 = vpop.f32.mrb[0].mxu0
        %v614 = vadd.f32 %v421, %v613
        %v615 = vpop.f32.mrb[0].mxu0
        %616 = vdwg.mxu0
        %v617 = vld [vmem:[%s389] sm:$0xff]
        %v618 = vld [vmem:[%s4] sm:$0xff]
        %v619 = vld [vmem:[%s4 + $0x8] sm:$0xff]
        %v620 = vld [vmem:[%s4 + $0x10] sm:$0xff]
        %v621 = vld [vmem:[%s4 + $0x18] sm:$0xff]
        %v622 = vld [vmem:[%s5] sm:$0x1]
        %v624 = vlaneseq
        %v625 = vshrl.u32 %v624, 7
        %v626 = vsub.s32 0, %v625
        %v627 = vrot.slane %v622, %v626
        %v630 = vsel %vm423, %v617, 0
        %632 = vmatprep.subr.mxu0 0.0
        %633 = vmatpush1.msra.mxu0 %v618
        %634 = vmatprep.subr.mxu0 0.0
        %635 = vmatpush1.msra.mxu0 %v619
        %636 = vmatprep.subr.mxu0 0.0
        %637 = vmatpush1.msra.mxu0 %v620
        %638 = vmatprep.subr.mxu0 0.0
        %639 = vmatpush1.msra.mxu0 %v621
        %640 = vmatprep.subr.mxu0 0.0
        %641 = vmatpush1.msra.mxu0 0.0
        %642 = vmatprep.subr.mxu0 0.0
        %643 = vmatpush1.msra.mxu0 0.0
        %644 = vmatprep.subr.mxu0 0.0
        %645 = vmatpush1.msra.mxu0 0.0
        %646 = vmatprep.subr.mxu0 0.0
        %647 = vmatpush1.msra.mxu0 0.0
        %648 = vmatprep.subr.mxu0 0.0
        %649 = vmatpush1.msra.mxu0 0.0
        %650 = vmatprep.subr.mxu0 0.0
        %651 = vmatpush1.msra.mxu0 0.0
        %652 = vmatprep.subr.mxu0 0.0
        %653 = vmatpush1.msra.mxu0 0.0
        %654 = vmatprep.subr.mxu0 0.0
        %655 = vmatpush1.msra.mxu0 0.0
        %656 = vmatprep.subr.mxu0 0.0
        %657 = vmatpush1.msra.mxu0 0.0
        %658 = vmatprep.subr.mxu0 0.0
        %659 = vmatpush1.msra.mxu0 0.0
        %660 = vmatprep.subr.mxu0 0.0
        %661 = vmatpush1.msra.mxu0 0.0
        %662 = vmatprep.subr.mxu0 0.0
        %663 = vmatpush1.msra.mxu0 0.0
        %664 = vmatprep.subr.mxu0 0.0
        %665 = vmatpush1.msra.mxu0 0.0
        %666 = vmatprep.subr.mxu0 0.0
        %667 = vmatpush1.msra.mxu0 0.0
        %668 = vmatprep.subr.mxu0 0.0
        %669 = vmatpush1.msra.mxu0 0.0
        %670 = vmatprep.subr.mxu0 0.0
        %671 = vmatpush1.msra.mxu0 0.0
        %672 = vmatprep.subr.mxu0 0.0
        %673 = vmatpush1.msra.mxu0 0.0
        %674 = vmatprep.subr.mxu0 0.0
        %675 = vmatpush1.msra.mxu0 0.0
        %676 = vmatprep.subr.mxu0 0.0
        %677 = vmatpush1.msra.mxu0 0.0
        %678 = vmatprep.subr.mxu0 0.0
        %679 = vmatpush1.msra.mxu0 0.0
        %680 = vmatprep.subr.mxu0 0.0
        %681 = vmatpush1.msra.mxu0 0.0
        %682 = vmatprep.subr.mxu0 0.0
        %683 = vmatpush1.msra.mxu0 0.0
        %684 = vmatprep.subr.mxu0 0.0
        %685 = vmatpush1.msra.mxu0 0.0
        %686 = vmatprep.subr.mxu0 0.0
        %687 = vmatpush1.msra.mxu0 0.0
        %688 = vmatprep.subr.mxu0 0.0
        %689 = vmatpush1.msra.mxu0 0.0
        %690 = vmatprep.subr.mxu0 0.0
        %691 = vmatpush1.msra.mxu0 0.0
        %692 = vmatprep.subr.mxu0 0.0
        %693 = vmatpush1.msra.mxu0 0.0
        %694 = vmatprep.subr.mxu0 0.0
        %695 = vmatpush1.msra.mxu0 0.0
        %696 = vmatprep.mubr.f32.mxu0 0.0
        %697 = vmatmul.mubr.f32.gmra.mrb[0].mxu0 %v630
        %v698 = vpop.f32.mrb[0].mxu0
        %v699 = vadd.f32 %v627, %v698
        %v700 = vpop.f32.mrb[0].mxu0
        %701 = vdwg.mxu0
        %v703 = vcombine.high %v699, %v699
        %v705 = vunpack.c.l.s4 1966171168
        %v706 = vunpack.c.0.s8 %v705
        %v707 = vlaneseq
        %v708 = vshrl.u32 %v707, 7
        %v709 = vsub.s32 %v706, %v708
        %v710 = vrot.slane %v699, %v709
        %v712 = vunpack.c.l.s4 1966171168
        %v713 = vunpack.c.0.s8 %v712
        %v714 = vlaneseq
        %v715 = vshrl.u32 %v714, 7
        %v716 = vsub.s32 %v713, %v715
        %v717 = vrot.slane %v703, %v716
        %v718 = vcombine.high %v710, %v710
        %v719 = vcombine.high %v717, %v717
        %v721 = vunpack.c.l.s4 1966171168
        %v722 = vunpack.c.0.s8 %v721
        %v723 = vlaneseq
        %v724 = vshrl.u32 %v723, 7
        %v725 = vsub.s32 %v722, %v724
        %v726 = vrot.slane %v710, %v725
        %v728 = vunpack.c.l.s4 1966171168
        %v729 = vunpack.c.0.s8 %v728
        %v730 = vlaneseq
        %v731 = vshrl.u32 %v730, 7
        %v732 = vsub.s32 %v729, %v731
        %v733 = vrot.slane %v717, %v732
        %v735 = vunpack.c.l.s4 1966171168
        %v736 = vunpack.c.0.s8 %v735
        %v737 = vlaneseq
        %v738 = vshrl.u32 %v737, 7
        %v739 = vsub.s32 %v736, %v738
        %v740 = vrot.slane %v718, %v739
        %v742 = vunpack.c.l.s4 1966171168
        %v743 = vunpack.c.0.s8 %v742
        %v744 = vlaneseq
        %v745 = vshrl.u32 %v744, 7
        %v746 = vsub.s32 %v743, %v745
        %v747 = vrot.slane %v719, %v746
        %v748 = vcombine.high %v726, %v726
        %v749 = vcombine.high %v733, %v733
        %v750 = vcombine.high %v740, %v740
        %v751 = vcombine.high %v747, %v747
        %v752 = vlaneseq
        %v753 = vshrl.u32 %v752, 7
        %v754 = vsub.s32 0, %v753
        %v755 = vrot.slane %v726, %v754
        %v756 = vlaneseq
        %v757 = vshrl.u32 %v756, 7
        %v758 = vsub.s32 0, %v757
        %v759 = vrot.slane %v740, %v758
        %v760 = vlaneseq
        %v761 = vshrl.u32 %v760, 7
        %v762 = vsub.s32 0, %v761
        %v763 = vrot.slane %v748, %v762
        %v764 = vlaneseq
        %v765 = vshrl.u32 %v764, 7
        %v766 = vsub.s32 0, %v765
        %v767 = vrot.slane %v750, %v766
        %v768 = vlaneseq
        %v769 = vshrl.u32 %v768, 7
        %v770 = vsub.s32 0, %v769
        %v771 = vrot.slane %v733, %v770
        %v772 = vlaneseq
        %v773 = vshrl.u32 %v772, 7
        %v774 = vsub.s32 0, %v773
        %v775 = vrot.slane %v747, %v774
        %v776 = vlaneseq
        %v777 = vshrl.u32 %v776, 7
        %v778 = vsub.s32 0, %v777
        %v779 = vrot.slane %v749, %v778
        %v780 = vlaneseq
        %v781 = vshrl.u32 %v780, 7
        %v782 = vsub.s32 0, %v781
        %v783 = vrot.slane %v751, %v782
        %v792 = vadd.f32 %v539, %v755
        %v793 = vadd.f32 %v544, %v755
        %v794 = vadd.f32 %v549, %v755
        %v795 = vadd.f32 %v554, %v755
        %v796 = vadd.f32 %v559, %v755
        %v797 = vadd.f32 %v564, %v755
        %v798 = vadd.f32 %v569, %v755
        %v799 = vadd.f32 %v574, %v755
        %v800 = vadd.f32 %v579, %v755
        %v801 = vadd.f32 %v584, %v755
        %v802 = vadd.f32 %v589, %v755
        %v803 = vadd.f32 %v594, %v755
        %v804 = vadd.f32 %v599, %v755
        %v805 = vadd.f32 %v604, %v755
        %v806 = vadd.f32 %v609, %v755
        %v807 = vadd.f32 %v614, %v755
        %v808 = vadd.f32 %v539, %v759
        %v809 = vadd.f32 %v544, %v759
        %v810 = vadd.f32 %v549, %v759
        %v811 = vadd.f32 %v554, %v759
        %v812 = vadd.f32 %v559, %v759
        %v813 = vadd.f32 %v564, %v759
        %v814 = vadd.f32 %v569, %v759
        %v815 = vadd.f32 %v574, %v759
        %v816 = vadd.f32 %v579, %v759
        %v817 = vadd.f32 %v584, %v759
        %v818 = vadd.f32 %v589, %v759
        %v819 = vadd.f32 %v594, %v759
        %v820 = vadd.f32 %v599, %v759
        %v821 = vadd.f32 %v604, %v759
        %v822 = vadd.f32 %v609, %v759
        %v823 = vadd.f32 %v614, %v759
        %v824 = vadd.f32 %v539, %v763
        %v825 = vadd.f32 %v544, %v763
        %v826 = vadd.f32 %v549, %v763
        %v827 = vadd.f32 %v554, %v763
        %v828 = vadd.f32 %v559, %v763
        %v829 = vadd.f32 %v564, %v763
        %v830 = vadd.f32 %v569, %v763
        %v831 = vadd.f32 %v574, %v763
        %v832 = vadd.f32 %v579, %v763
        %v833 = vadd.f32 %v584, %v763
        %v834 = vadd.f32 %v589, %v763
        %v835 = vadd.f32 %v594, %v763
        %v836 = vadd.f32 %v599, %v763
        %v837 = vadd.f32 %v604, %v763
        %v838 = vadd.f32 %v609, %v763
        %v839 = vadd.f32 %v614, %v763
        %v840 = vadd.f32 %v539, %v767
        %v841 = vadd.f32 %v544, %v767
        %v842 = vadd.f32 %v549, %v767
        %v843 = vadd.f32 %v554, %v767
        %v844 = vadd.f32 %v559, %v767
        %v845 = vadd.f32 %v564, %v767
        %v846 = vadd.f32 %v569, %v767
        %v847 = vadd.f32 %v574, %v767
        %v848 = vadd.f32 %v579, %v767
        %v849 = vadd.f32 %v584, %v767
        %v850 = vadd.f32 %v589, %v767
        %v851 = vadd.f32 %v594, %v767
        %v852 = vadd.f32 %v599, %v767
        %v853 = vadd.f32 %v604, %v767
        %v854 = vadd.f32 %v609, %v767
        %v855 = vadd.f32 %v614, %v767
        %v856 = vadd.f32 %v539, %v771
        %v857 = vadd.f32 %v544, %v771
        %v858 = vadd.f32 %v549, %v771
        %v859 = vadd.f32 %v554, %v771
        %v860 = vadd.f32 %v559, %v771
        %v861 = vadd.f32 %v564, %v771
        %v862 = vadd.f32 %v569, %v771
        %v863 = vadd.f32 %v574, %v771
        %v864 = vadd.f32 %v579, %v771
        %v865 = vadd.f32 %v584, %v771
        %v866 = vadd.f32 %v589, %v771
        %v867 = vadd.f32 %v594, %v771
        %v868 = vadd.f32 %v599, %v771
        %v869 = vadd.f32 %v604, %v771
        %v870 = vadd.f32 %v609, %v771
        %v871 = vadd.f32 %v614, %v771
        %v872 = vadd.f32 %v539, %v775
        %v873 = vadd.f32 %v544, %v775
        %v874 = vadd.f32 %v549, %v775
        %v875 = vadd.f32 %v554, %v775
        %v876 = vadd.f32 %v559, %v775
        %v877 = vadd.f32 %v564, %v775
        %v878 = vadd.f32 %v569, %v775
        %v879 = vadd.f32 %v574, %v775
        %v880 = vadd.f32 %v579, %v775
        %v881 = vadd.f32 %v584, %v775
        %v882 = vadd.f32 %v589, %v775
        %v883 = vadd.f32 %v594, %v775
        %v884 = vadd.f32 %v599, %v775
        %v885 = vadd.f32 %v604, %v775
        %v886 = vadd.f32 %v609, %v775
        %v887 = vadd.f32 %v614, %v775
        %v888 = vadd.f32 %v539, %v779
        %v889 = vadd.f32 %v544, %v779
        %v890 = vadd.f32 %v549, %v779
        %v891 = vadd.f32 %v554, %v779
        %v892 = vadd.f32 %v559, %v779
        %v893 = vadd.f32 %v564, %v779
        %v894 = vadd.f32 %v569, %v779
        %v895 = vadd.f32 %v574, %v779
        %v896 = vadd.f32 %v579, %v779
        %v897 = vadd.f32 %v584, %v779
        %v898 = vadd.f32 %v589, %v779
        %v899 = vadd.f32 %v594, %v779
        %v900 = vadd.f32 %v599, %v779
        %v901 = vadd.f32 %v604, %v779
        %v902 = vadd.f32 %v609, %v779
        %v903 = vadd.f32 %v614, %v779
        %v904 = vadd.f32 %v539, %v783
        %v905 = vadd.f32 %v544, %v783
        %v906 = vadd.f32 %v549, %v783
        %v907 = vadd.f32 %v554, %v783
        %v908 = vadd.f32 %v559, %v783
        %v909 = vadd.f32 %v564, %v783
        %v910 = vadd.f32 %v569, %v783
        %v911 = vadd.f32 %v574, %v783
        %v912 = vadd.f32 %v579, %v783
        %v913 = vadd.f32 %v584, %v783
        %v914 = vadd.f32 %v589, %v783
        %v915 = vadd.f32 %v594, %v783
        %v916 = vadd.f32 %v599, %v783
        %v917 = vadd.f32 %v604, %v783
        %v918 = vadd.f32 %v609, %v783
        %v919 = vadd.f32 %v614, %v783
        %v920 = vmax.f32 %v792, 0.0
        %v921 = vmax.f32 %v793, 0.0
        %v922 = vmax.f32 %v794, 0.0
        %v923 = vmax.f32 %v795, 0.0
        %v924 = vmax.f32 %v796, 0.0
        %v925 = vmax.f32 %v797, 0.0
        %v926 = vmax.f32 %v798, 0.0
        %v927 = vmax.f32 %v799, 0.0
        %v928 = vmax.f32 %v800, 0.0
        %v929 = vmax.f32 %v801, 0.0
        %v930 = vmax.f32 %v802, 0.0
        %v931 = vmax.f32 %v803, 0.0
        %v932 = vmax.f32 %v804, 0.0
        %v933 = vmax.f32 %v805, 0.0
        %v934 = vmax.f32 %v806, 0.0
        %v935 = vmax.f32 %v807, 0.0
        %v936 = vmax.f32 %v808, 0.0
        %v937 = vmax.f32 %v809, 0.0
        %v938 = vmax.f32 %v810, 0.0
        %v939 = vmax.f32 %v811, 0.0
        %v940 = vmax.f32 %v812, 0.0
        %v941 = vmax.f32 %v813, 0.0
        %v942 = vmax.f32 %v814, 0.0
        %v943 = vmax.f32 %v815, 0.0
        %v944 = vmax.f32 %v816, 0.0
        %v945 = vmax.f32 %v817, 0.0
        %v946 = vmax.f32 %v818, 0.0
        %v947 = vmax.f32 %v819, 0.0
        %v948 = vmax.f32 %v820, 0.0
        %v949 = vmax.f32 %v821, 0.0
        %v950 = vmax.f32 %v822, 0.0
        %v951 = vmax.f32 %v823, 0.0
        %v952 = vmax.f32 %v824, 0.0
        %v953 = vmax.f32 %v825, 0.0
        %v954 = vmax.f32 %v826, 0.0
        %v955 = vmax.f32 %v827, 0.0
        %v956 = vmax.f32 %v828, 0.0
        %v957 = vmax.f32 %v829, 0.0
        %v958 = vmax.f32 %v830, 0.0
        %v959 = vmax.f32 %v831, 0.0
        %v960 = vmax.f32 %v832, 0.0
        %v961 = vmax.f32 %v833, 0.0
        %v962 = vmax.f32 %v834, 0.0
        %v963 = vmax.f32 %v835, 0.0
        %v964 = vmax.f32 %v836, 0.0
        %v965 = vmax.f32 %v837, 0.0
        %v966 = vmax.f32 %v838, 0.0
        %v967 = vmax.f32 %v839, 0.0
        %v968 = vmax.f32 %v840, 0.0
        %v969 = vmax.f32 %v841, 0.0
        %v970 = vmax.f32 %v842, 0.0
        %v971 = vmax.f32 %v843, 0.0
        %v972 = vmax.f32 %v844, 0.0
        %v973 = vmax.f32 %v845, 0.0
        %v974 = vmax.f32 %v846, 0.0
        %v975 = vmax.f32 %v847, 0.0
        %v976 = vmax.f32 %v848, 0.0
        %v977 = vmax.f32 %v849, 0.0
        %v978 = vmax.f32 %v850, 0.0
        %v979 = vmax.f32 %v851, 0.0
        %v980 = vmax.f32 %v852, 0.0
        %v981 = vmax.f32 %v853, 0.0
        %v982 = vmax.f32 %v854, 0.0
        %v983 = vmax.f32 %v855, 0.0
        %v984 = vmax.f32 %v856, 0.0
        %v985 = vmax.f32 %v857, 0.0
        %v986 = vmax.f32 %v858, 0.0
        %v987 = vmax.f32 %v859, 0.0
        %v988 = vmax.f32 %v860, 0.0
        %v989 = vmax.f32 %v861, 0.0
        %v990 = vmax.f32 %v862, 0.0
        %v991 = vmax.f32 %v863, 0.0
        %v992 = vmax.f32 %v864, 0.0
        %v993 = vmax.f32 %v865, 0.0
        %v994 = vmax.f32 %v866, 0.0
        %v995 = vmax.f32 %v867, 0.0
        %v996 = vmax.f32 %v868, 0.0
        %v997 = vmax.f32 %v869, 0.0
        %v998 = vmax.f32 %v870, 0.0
        %v999 = vmax.f32 %v871, 0.0
        %v1000 = vmax.f32 %v872, 0.0
        %v1001 = vmax.f32 %v873, 0.0
        %v1002 = vmax.f32 %v874, 0.0
        %v1003 = vmax.f32 %v875, 0.0
        %v1004 = vmax.f32 %v876, 0.0
        %v1005 = vmax.f32 %v877, 0.0
        %v1006 = vmax.f32 %v878, 0.0
        %v1007 = vmax.f32 %v879, 0.0
        %v1008 = vmax.f32 %v880, 0.0
        %v1009 = vmax.f32 %v881, 0.0
        %v1010 = vmax.f32 %v882, 0.0
        %v1011 = vmax.f32 %v883, 0.0
        %v1012 = vmax.f32 %v884, 0.0
        %v1013 = vmax.f32 %v885, 0.0
        %v1014 = vmax.f32 %v886, 0.0
        %v1015 = vmax.f32 %v887, 0.0
        %v1016 = vmax.f32 %v888, 0.0
        %v1017 = vmax.f32 %v889, 0.0
        %v1018 = vmax.f32 %v890, 0.0
        %v1019 = vmax.f32 %v891, 0.0
        %v1020 = vmax.f32 %v892, 0.0
        %v1021 = vmax.f32 %v893, 0.0
        %v1022 = vmax.f32 %v894, 0.0
        %v1023 = vmax.f32 %v895, 0.0
        %v1024 = vmax.f32 %v896, 0.0
        %v1025 = vmax.f32 %v897, 0.0
        %v1026 = vmax.f32 %v898, 0.0
        %v1027 = vmax.f32 %v899, 0.0
        %v1028 = vmax.f32 %v900, 0.0
        %v1029 = vmax.f32 %v901, 0.0
        %v1030 = vmax.f32 %v902, 0.0
        %v1031 = vmax.f32 %v903, 0.0
        %v1032 = vmax.f32 %v904, 0.0
        %v1033 = vmax.f32 %v905, 0.0
        %v1034 = vmax.f32 %v906, 0.0
        %v1035 = vmax.f32 %v907, 0.0
        %v1036 = vmax.f32 %v908, 0.0
        %v1037 = vmax.f32 %v909, 0.0
        %v1038 = vmax.f32 %v910, 0.0
        %v1039 = vmax.f32 %v911, 0.0
        %v1040 = vmax.f32 %v912, 0.0
        %v1041 = vmax.f32 %v913, 0.0
        %v1042 = vmax.f32 %v914, 0.0
        %v1043 = vmax.f32 %v915, 0.0
        %v1044 = vmax.f32 %v916, 0.0
        %v1045 = vmax.f32 %v917, 0.0
        %v1046 = vmax.f32 %v918, 0.0
        %v1047 = vmax.f32 %v919, 0.0
        %v1048 = vld [vmem:[%s6] sm:$0x1]
        %v1050 = vlaneseq
        %v1051 = vshrl.u32 %v1050, 7
        %v1052 = vsub.s32 0, %v1051
        %v1053 = vrot.slane %v1048, %v1052
        %v1055 = vmul.f32 %v920, %v1053
        %v1056 = vmul.f32 %v921, %v1053
        %v1057 = vmul.f32 %v922, %v1053
        %v1058 = vmul.f32 %v923, %v1053
        %v1059 = vmul.f32 %v924, %v1053
        %v1060 = vmul.f32 %v925, %v1053
        %v1061 = vmul.f32 %v926, %v1053
        %v1062 = vmul.f32 %v927, %v1053
        %v1063 = vmul.f32 %v928, %v1053
        %v1064 = vmul.f32 %v929, %v1053
        %v1065 = vmul.f32 %v930, %v1053
        %v1066 = vmul.f32 %v931, %v1053
        %v1067 = vmul.f32 %v932, %v1053
        %v1068 = vmul.f32 %v933, %v1053
        %v1069 = vmul.f32 %v934, %v1053
        %v1070 = vmul.f32 %v935, %v1053
        %v1071 = vmul.f32 %v936, %v1053
        %v1072 = vmul.f32 %v937, %v1053
        %v1073 = vmul.f32 %v938, %v1053
        %v1074 = vmul.f32 %v939, %v1053
        %v1075 = vmul.f32 %v940, %v1053
        %v1076 = vmul.f32 %v941, %v1053
        %v1077 = vmul.f32 %v942, %v1053
        %v1078 = vmul.f32 %v943, %v1053
        %v1079 = vmul.f32 %v944, %v1053
        %v1080 = vmul.f32 %v945, %v1053
        %v1081 = vmul.f32 %v946, %v1053
        %v1082 = vmul.f32 %v947, %v1053
        %v1083 = vmul.f32 %v948, %v1053
        %v1084 = vmul.f32 %v949, %v1053
        %v1085 = vmul.f32 %v950, %v1053
        %v1086 = vmul.f32 %v951, %v1053
        %v1087 = vmul.f32 %v952, %v1053
        %v1088 = vmul.f32 %v953, %v1053
        %v1089 = vmul.f32 %v954, %v1053
        %v1090 = vmul.f32 %v955, %v1053
        %v1091 = vmul.f32 %v956, %v1053
        %v1092 = vmul.f32 %v957, %v1053
        %v1093 = vmul.f32 %v958, %v1053
        %v1094 = vmul.f32 %v959, %v1053
        %v1095 = vmul.f32 %v960, %v1053
        %v1096 = vmul.f32 %v961, %v1053
        %v1097 = vmul.f32 %v962, %v1053
        %v1098 = vmul.f32 %v963, %v1053
        %v1099 = vmul.f32 %v964, %v1053
        %v1100 = vmul.f32 %v965, %v1053
        %v1101 = vmul.f32 %v966, %v1053
        %v1102 = vmul.f32 %v967, %v1053
        %v1103 = vmul.f32 %v968, %v1053
        %v1104 = vmul.f32 %v969, %v1053
        %v1105 = vmul.f32 %v970, %v1053
        %v1106 = vmul.f32 %v971, %v1053
        %v1107 = vmul.f32 %v972, %v1053
        %v1108 = vmul.f32 %v973, %v1053
        %v1109 = vmul.f32 %v974, %v1053
        %v1110 = vmul.f32 %v975, %v1053
        %v1111 = vmul.f32 %v976, %v1053
        %v1112 = vmul.f32 %v977, %v1053
        %v1113 = vmul.f32 %v978, %v1053
        %v1114 = vmul.f32 %v979, %v1053
        %v1115 = vmul.f32 %v980, %v1053
        %v1116 = vmul.f32 %v981, %v1053
        %v1117 = vmul.f32 %v982, %v1053
        %v1118 = vmul.f32 %v983, %v1053
        %v1119 = vmul.f32 %v984, %v1053
        %v1120 = vmul.f32 %v985, %v1053
        %v1121 = vmul.f32 %v986, %v1053
        %v1122 = vmul.f32 %v987, %v1053
        %v1123 = vmul.f32 %v988, %v1053
        %v1124 = vmul.f32 %v989, %v1053
        %v1125 = vmul.f32 %v990, %v1053
        %v1126 = vmul.f32 %v991, %v1053
        %v1127 = vmul.f32 %v992, %v1053
        %v1128 = vmul.f32 %v993, %v1053
        %v1129 = vmul.f32 %v994, %v1053
        %v1130 = vmul.f32 %v995, %v1053
        %v1131 = vmul.f32 %v996, %v1053
        %v1132 = vmul.f32 %v997, %v1053
        %v1133 = vmul.f32 %v998, %v1053
        %v1134 = vmul.f32 %v999, %v1053
        %v1135 = vmul.f32 %v1000, %v1053
        %v1136 = vmul.f32 %v1001, %v1053
        %v1137 = vmul.f32 %v1002, %v1053
        %v1138 = vmul.f32 %v1003, %v1053
        %v1139 = vmul.f32 %v1004, %v1053
        %v1140 = vmul.f32 %v1005, %v1053
        %v1141 = vmul.f32 %v1006, %v1053
        %v1142 = vmul.f32 %v1007, %v1053
        %v1143 = vmul.f32 %v1008, %v1053
        %v1144 = vmul.f32 %v1009, %v1053
        %v1145 = vmul.f32 %v1010, %v1053
        %v1146 = vmul.f32 %v1011, %v1053
        %v1147 = vmul.f32 %v1012, %v1053
        %v1148 = vmul.f32 %v1013, %v1053
        %v1149 = vmul.f32 %v1014, %v1053
        %v1150 = vmul.f32 %v1015, %v1053
        %v1151 = vmul.f32 %v1016, %v1053
        %v1152 = vmul.f32 %v1017, %v1053
        %v1153 = vmul.f32 %v1018, %v1053
        %v1154 = vmul.f32 %v1019, %v1053
        %v1155 = vmul.f32 %v1020, %v1053
        %v1156 = vmul.f32 %v1021, %v1053
        %v1157 = vmul.f32 %v1022, %v1053
        %v1158 = vmul.f32 %v1023, %v1053
        %v1159 = vmul.f32 %v1024, %v1053
        %v1160 = vmul.f32 %v1025, %v1053
        %v1161 = vmul.f32 %v1026, %v1053
        %v1162 = vmul.f32 %v1027, %v1053
        %v1163 = vmul.f32 %v1028, %v1053
        %v1164 = vmul.f32 %v1029, %v1053
        %v1165 = vmul.f32 %v1030, %v1053
        %v1166 = vmul.f32 %v1031, %v1053
        %v1167 = vmul.f32 %v1032, %v1053
        %v1168 = vmul.f32 %v1033, %v1053
        %v1169 = vmul.f32 %v1034, %v1053
        %v1170 = vmul.f32 %v1035, %v1053
        %v1171 = vmul.f32 %v1036, %v1053
        %v1172 = vmul.f32 %v1037, %v1053
        %v1173 = vmul.f32 %v1038, %v1053
        %v1174 = vmul.f32 %v1039, %v1053
        %v1175 = vmul.f32 %v1040, %v1053
        %v1176 = vmul.f32 %v1041, %v1053
        %v1177 = vmul.f32 %v1042, %v1053
        %v1178 = vmul.f32 %v1043, %v1053
        %v1179 = vmul.f32 %v1044, %v1053
        %v1180 = vmul.f32 %v1045, %v1053
        %v1181 = vmul.f32 %v1046, %v1053
        %v1182 = vmul.f32 %v1047, %v1053
        %v1183 = vsel %vm423, %v1055, 0.0
        %1184 = vadd.xlane.f32.xlu0 %v1183
        %v1185 = vpop.xlane.xlu0 %1184
        %v1186 = vsel %vm423, %v1056, 0.0
        %1187 = vadd.xlane.f32.xlu0 %v1186
        %v1188 = vpop.xlane.xlu0 %1187
        %v1189 = vsel %vm423, %v1057, 0.0
        %1190 = vadd.xlane.f32.xlu0 %v1189
        %v1191 = vpop.xlane.xlu0 %1190
        %v1192 = vsel %vm423, %v1058, 0.0
        %1193 = vadd.xlane.f32.xlu0 %v1192
        %v1194 = vpop.xlane.xlu0 %1193
        %v1195 = vsel %vm423, %v1059, 0.0
        %1196 = vadd.xlane.f32.xlu0 %v1195
        %v1197 = vpop.xlane.xlu0 %1196
        %v1198 = vsel %vm423, %v1060, 0.0
        %1199 = vadd.xlane.f32.xlu0 %v1198
        %v1200 = vpop.xlane.xlu0 %1199
        %v1201 = vsel %vm423, %v1061, 0.0
        %1202 = vadd.xlane.f32.xlu0 %v1201
        %v1203 = vpop.xlane.xlu0 %1202
        %v1204 = vsel %vm423, %v1062, 0.0
        %1205 = vadd.xlane.f32.xlu0 %v1204
        %v1206 = vpop.xlane.xlu0 %1205
        %v1207 = vsel %vm423, %v1063, 0.0
        %1208 = vadd.xlane.f32.xlu0 %v1207
        %v1209 = vpop.xlane.xlu0 %1208
        %v1210 = vsel %vm423, %v1064, 0.0
        %1211 = vadd.xlane.f32.xlu0 %v1210
        %v1212 = vpop.xlane.xlu0 %1211
        %v1213 = vsel %vm423, %v1065, 0.0
        %1214 = vadd.xlane.f32.xlu0 %v1213
        %v1215 = vpop.xlane.xlu0 %1214
        %v1216 = vsel %vm423, %v1066, 0.0
        %1217 = vadd.xlane.f32.xlu0 %v1216
        %v1218 = vpop.xlane.xlu0 %1217
        %v1219 = vsel %vm423, %v1067, 0.0
        %1220 = vadd.xlane.f32.xlu0 %v1219
        %v1221 = vpop.xlane.xlu0 %1220
        %v1222 = vsel %vm423, %v1068, 0.0
        %1223 = vadd.xlane.f32.xlu0 %v1222
        %v1224 = vpop.xlane.xlu0 %1223
        %v1225 = vsel %vm423, %v1069, 0.0
        %1226 = vadd.xlane.f32.xlu0 %v1225
        %v1227 = vpop.xlane.xlu0 %1226
        %v1228 = vsel %vm423, %v1070, 0.0
        %1229 = vadd.xlane.f32.xlu0 %v1228
        %v1230 = vpop.xlane.xlu0 %1229
        %v1231 = vsel %vm423, %v1071, 0.0
        %1232 = vadd.xlane.f32.xlu0 %v1231
        %v1233 = vpop.xlane.xlu0 %1232
        %v1234 = vsel %vm423, %v1072, 0.0
        %1235 = vadd.xlane.f32.xlu0 %v1234
        %v1236 = vpop.xlane.xlu0 %1235
        %v1237 = vsel %vm423, %v1073, 0.0
        %1238 = vadd.xlane.f32.xlu0 %v1237
        %v1239 = vpop.xlane.xlu0 %1238
        %v1240 = vsel %vm423, %v1074, 0.0
        %1241 = vadd.xlane.f32.xlu0 %v1240
        %v1242 = vpop.xlane.xlu0 %1241
        %v1243 = vsel %vm423, %v1075, 0.0
        %1244 = vadd.xlane.f32.xlu0 %v1243
        %v1245 = vpop.xlane.xlu0 %1244
        %v1246 = vsel %vm423, %v1076, 0.0
        %1247 = vadd.xlane.f32.xlu0 %v1246
        %v1248 = vpop.xlane.xlu0 %1247
        %v1249 = vsel %vm423, %v1077, 0.0
        %1250 = vadd.xlane.f32.xlu0 %v1249
        %v1251 = vpop.xlane.xlu0 %1250
        %v1252 = vsel %vm423, %v1078, 0.0
        %1253 = vadd.xlane.f32.xlu0 %v1252
        %v1254 = vpop.xlane.xlu0 %1253
        %v1255 = vsel %vm423, %v1079, 0.0
        %1256 = vadd.xlane.f32.xlu0 %v1255
        %v1257 = vpop.xlane.xlu0 %1256
        %v1258 = vsel %vm423, %v1080, 0.0
        %1259 = vadd.xlane.f32.xlu0 %v1258
        %v1260 = vpop.xlane.xlu0 %1259
        %v1261 = vsel %vm423, %v1081, 0.0
        %1262 = vadd.xlane.f32.xlu0 %v1261
        %v1263 = vpop.xlane.xlu0 %1262
        %v1264 = vsel %vm423, %v1082, 0.0
        %1265 = vadd.xlane.f32.xlu0 %v1264
        %v1266 = vpop.xlane.xlu0 %1265
        %v1267 = vsel %vm423, %v1083, 0.0
        %1268 = vadd.xlane.f32.xlu0 %v1267
        %v1269 = vpop.xlane.xlu0 %1268
        %v1270 = vsel %vm423, %v1084, 0.0
        %1271 = vadd.xlane.f32.xlu0 %v1270
        %v1272 = vpop.xlane.xlu0 %1271
        %v1273 = vsel %vm423, %v1085, 0.0
        %1274 = vadd.xlane.f32.xlu0 %v1273
        %v1275 = vpop.xlane.xlu0 %1274
        %v1276 = vsel %vm423, %v1086, 0.0
        %1277 = vadd.xlane.f32.xlu0 %v1276
        %v1278 = vpop.xlane.xlu0 %1277
        %v1279 = vsel %vm423, %v1087, 0.0
        %1280 = vadd.xlane.f32.xlu0 %v1279
        %v1281 = vpop.xlane.xlu0 %1280
        %v1282 = vsel %vm423, %v1088, 0.0
        %1283 = vadd.xlane.f32.xlu0 %v1282
        %v1284 = vpop.xlane.xlu0 %1283
        %v1285 = vsel %vm423, %v1089, 0.0
        %1286 = vadd.xlane.f32.xlu0 %v1285
        %v1287 = vpop.xlane.xlu0 %1286
        %v1288 = vsel %vm423, %v1090, 0.0
        %1289 = vadd.xlane.f32.xlu0 %v1288
        %v1290 = vpop.xlane.xlu0 %1289
        %v1291 = vsel %vm423, %v1091, 0.0
        %1292 = vadd.xlane.f32.xlu0 %v1291
        %v1293 = vpop.xlane.xlu0 %1292
        %v1294 = vsel %vm423, %v1092, 0.0
        %1295 = vadd.xlane.f32.xlu0 %v1294
        %v1296 = vpop.xlane.xlu0 %1295
        %v1297 = vsel %vm423, %v1093, 0.0
        %1298 = vadd.xlane.f32.xlu0 %v1297
        %v1299 = vpop.xlane.xlu0 %1298
        %v1300 = vsel %vm423, %v1094, 0.0
        %1301 = vadd.xlane.f32.xlu0 %v1300
        %v1302 = vpop.xlane.xlu0 %1301
        %v1303 = vsel %vm423, %v1095, 0.0
        %1304 = vadd.xlane.f32.xlu0 %v1303
        %v1305 = vpop.xlane.xlu0 %1304
        %v1306 = vsel %vm423, %v1096, 0.0
        %1307 = vadd.xlane.f32.xlu0 %v1306
        %v1308 = vpop.xlane.xlu0 %1307
        %v1309 = vsel %vm423, %v1097, 0.0
        %1310 = vadd.xlane.f32.xlu0 %v1309
        %v1311 = vpop.xlane.xlu0 %1310
        %v1312 = vsel %vm423, %v1098, 0.0
        %1313 = vadd.xlane.f32.xlu0 %v1312
        %v1314 = vpop.xlane.xlu0 %1313
        %v1315 = vsel %vm423, %v1099, 0.0
        %1316 = vadd.xlane.f32.xlu0 %v1315
        %v1317 = vpop.xlane.xlu0 %1316
        %v1318 = vsel %vm423, %v1100, 0.0
        %1319 = vadd.xlane.f32.xlu0 %v1318
        %v1320 = vpop.xlane.xlu0 %1319
        %v1321 = vsel %vm423, %v1101, 0.0
        %1322 = vadd.xlane.f32.xlu0 %v1321
        %v1323 = vpop.xlane.xlu0 %1322
        %v1324 = vsel %vm423, %v1102, 0.0
        %1325 = vadd.xlane.f32.xlu0 %v1324
        %v1326 = vpop.xlane.xlu0 %1325
        %v1327 = vsel %vm423, %v1103, 0.0
        %1328 = vadd.xlane.f32.xlu0 %v1327
        %v1329 = vpop.xlane.xlu0 %1328
        %v1330 = vsel %vm423, %v1104, 0.0
        %1331 = vadd.xlane.f32.xlu0 %v1330
        %v1332 = vpop.xlane.xlu0 %1331
        %v1333 = vsel %vm423, %v1105, 0.0
        %1334 = vadd.xlane.f32.xlu0 %v1333
        %v1335 = vpop.xlane.xlu0 %1334
        %v1336 = vsel %vm423, %v1106, 0.0
        %1337 = vadd.xlane.f32.xlu0 %v1336
        %v1338 = vpop.xlane.xlu0 %1337
        %v1339 = vsel %vm423, %v1107, 0.0
        %1340 = vadd.xlane.f32.xlu0 %v1339
        %v1341 = vpop.xlane.xlu0 %1340
        %v1342 = vsel %vm423, %v1108, 0.0
        %1343 = vadd.xlane.f32.xlu0 %v1342
        %v1344 = vpop.xlane.xlu0 %1343
        %v1345 = vsel %vm423, %v1109, 0.0
        %1346 = vadd.xlane.f32.xlu0 %v1345
        %v1347 = vpop.xlane.xlu0 %1346
        %v1348 = vsel %vm423, %v1110, 0.0
        %1349 = vadd.xlane.f32.xlu0 %v1348
        %v1350 = vpop.xlane.xlu0 %1349
        %v1351 = vsel %vm423, %v1111, 0.0
        %1352 = vadd.xlane.f32.xlu0 %v1351
        %v1353 = vpop.xlane.xlu0 %1352
        %v1354 = vsel %vm423, %v1112, 0.0
        %1355 = vadd.xlane.f32.xlu0 %v1354
        %v1356 = vpop.xlane.xlu0 %1355
        %v1357 = vsel %vm423, %v1113, 0.0
        %1358 = vadd.xlane.f32.xlu0 %v1357
        %v1359 = vpop.xlane.xlu0 %1358
        %v1360 = vsel %vm423, %v1114, 0.0
        %1361 = vadd.xlane.f32.xlu0 %v1360
        %v1362 = vpop.xlane.xlu0 %1361
        %v1363 = vsel %vm423, %v1115, 0.0
        %1364 = vadd.xlane.f32.xlu0 %v1363
        %v1365 = vpop.xlane.xlu0 %1364
        %v1366 = vsel %vm423, %v1116, 0.0
        %1367 = vadd.xlane.f32.xlu0 %v1366
        %v1368 = vpop.xlane.xlu0 %1367
        %v1369 = vsel %vm423, %v1117, 0.0
        %1370 = vadd.xlane.f32.xlu0 %v1369
        %v1371 = vpop.xlane.xlu0 %1370
        %v1372 = vsel %vm423, %v1118, 0.0
        %1373 = vadd.xlane.f32.xlu0 %v1372
        %v1374 = vpop.xlane.xlu0 %1373
        %v1375 = vsel %vm423, %v1119, 0.0
        %1376 = vadd.xlane.f32.xlu0 %v1375
        %v1377 = vpop.xlane.xlu0 %1376
        %v1378 = vsel %vm423, %v1120, 0.0
        %1379 = vadd.xlane.f32.xlu0 %v1378
        %v1380 = vpop.xlane.xlu0 %1379
        %v1381 = vsel %vm423, %v1121, 0.0
        %1382 = vadd.xlane.f32.xlu0 %v1381
        %v1383 = vpop.xlane.xlu0 %1382
        %v1384 = vsel %vm423, %v1122, 0.0
        %1385 = vadd.xlane.f32.xlu0 %v1384
        %v1386 = vpop.xlane.xlu0 %1385
        %v1387 = vsel %vm423, %v1123, 0.0
        %1388 = vadd.xlane.f32.xlu0 %v1387
        %v1389 = vpop.xlane.xlu0 %1388
        %v1390 = vsel %vm423, %v1124, 0.0
        %1391 = vadd.xlane.f32.xlu0 %v1390
        %v1392 = vpop.xlane.xlu0 %1391
        %v1393 = vsel %vm423, %v1125, 0.0
        %1394 = vadd.xlane.f32.xlu0 %v1393
        %v1395 = vpop.xlane.xlu0 %1394
        %v1396 = vsel %vm423, %v1126, 0.0
        %1397 = vadd.xlane.f32.xlu0 %v1396
        %v1398 = vpop.xlane.xlu0 %1397
        %v1399 = vsel %vm423, %v1127, 0.0
        %1400 = vadd.xlane.f32.xlu0 %v1399
        %v1401 = vpop.xlane.xlu0 %1400
        %v1402 = vsel %vm423, %v1128, 0.0
        %1403 = vadd.xlane.f32.xlu0 %v1402
        %v1404 = vpop.xlane.xlu0 %1403
        %v1405 = vsel %vm423, %v1129, 0.0
        %1406 = vadd.xlane.f32.xlu0 %v1405
        %v1407 = vpop.xlane.xlu0 %1406
        %v1408 = vsel %vm423, %v1130, 0.0
        %1409 = vadd.xlane.f32.xlu0 %v1408
        %v1410 = vpop.xlane.xlu0 %1409
        %v1411 = vsel %vm423, %v1131, 0.0
        %1412 = vadd.xlane.f32.xlu0 %v1411
        %v1413 = vpop.xlane.xlu0 %1412
        %v1414 = vsel %vm423, %v1132, 0.0
        %1415 = vadd.xlane.f32.xlu0 %v1414
        %v1416 = vpop.xlane.xlu0 %1415
        %v1417 = vsel %vm423, %v1133, 0.0
        %1418 = vadd.xlane.f32.xlu0 %v1417
        %v1419 = vpop.xlane.xlu0 %1418
        %v1420 = vsel %vm423, %v1134, 0.0
        %1421 = vadd.xlane.f32.xlu0 %v1420
        %v1422 = vpop.xlane.xlu0 %1421
        %v1423 = vsel %vm423, %v1135, 0.0
        %1424 = vadd.xlane.f32.xlu0 %v1423
        %v1425 = vpop.xlane.xlu0 %1424
        %v1426 = vsel %vm423, %v1136, 0.0
        %1427 = vadd.xlane.f32.xlu0 %v1426
        %v1428 = vpop.xlane.xlu0 %1427
        %v1429 = vsel %vm423, %v1137, 0.0
        %1430 = vadd.xlane.f32.xlu0 %v1429
        %v1431 = vpop.xlane.xlu0 %1430
        %v1432 = vsel %vm423, %v1138, 0.0
        %1433 = vadd.xlane.f32.xlu0 %v1432
        %v1434 = vpop.xlane.xlu0 %1433
        %v1435 = vsel %vm423, %v1139, 0.0
        %1436 = vadd.xlane.f32.xlu0 %v1435
        %v1437 = vpop.xlane.xlu0 %1436
        %v1438 = vsel %vm423, %v1140, 0.0
        %1439 = vadd.xlane.f32.xlu0 %v1438
        %v1440 = vpop.xlane.xlu0 %1439
        %v1441 = vsel %vm423, %v1141, 0.0
        %1442 = vadd.xlane.f32.xlu0 %v1441
        %v1443 = vpop.xlane.xlu0 %1442
        %v1444 = vsel %vm423, %v1142, 0.0
        %1445 = vadd.xlane.f32.xlu0 %v1444
        %v1446 = vpop.xlane.xlu0 %1445
        %v1447 = vsel %vm423, %v1143, 0.0
        %1448 = vadd.xlane.f32.xlu0 %v1447
        %v1449 = vpop.xlane.xlu0 %1448
        %v1450 = vsel %vm423, %v1144, 0.0
        %1451 = vadd.xlane.f32.xlu0 %v1450
        %v1452 = vpop.xlane.xlu0 %1451
        %v1453 = vsel %vm423, %v1145, 0.0
        %1454 = vadd.xlane.f32.xlu0 %v1453
        %v1455 = vpop.xlane.xlu0 %1454
        %v1456 = vsel %vm423, %v1146, 0.0
        %1457 = vadd.xlane.f32.xlu0 %v1456
        %v1458 = vpop.xlane.xlu0 %1457
        %v1459 = vsel %vm423, %v1147, 0.0
        %1460 = vadd.xlane.f32.xlu0 %v1459
        %v1461 = vpop.xlane.xlu0 %1460
        %v1462 = vsel %vm423, %v1148, 0.0
        %1463 = vadd.xlane.f32.xlu0 %v1462
        %v1464 = vpop.xlane.xlu0 %1463
        %v1465 = vsel %vm423, %v1149, 0.0
        %1466 = vadd.xlane.f32.xlu0 %v1465
        %v1467 = vpop.xlane.xlu0 %1466
        %v1468 = vsel %vm423, %v1150, 0.0
        %1469 = vadd.xlane.f32.xlu0 %v1468
        %v1470 = vpop.xlane.xlu0 %1469
        %v1471 = vsel %vm423, %v1151, 0.0
        %1472 = vadd.xlane.f32.xlu0 %v1471
        %v1473 = vpop.xlane.xlu0 %1472
        %v1474 = vsel %vm423, %v1152, 0.0
        %1475 = vadd.xlane.f32.xlu0 %v1474
        %v1476 = vpop.xlane.xlu0 %1475
        %v1477 = vsel %vm423, %v1153, 0.0
        %1478 = vadd.xlane.f32.xlu0 %v1477
        %v1479 = vpop.xlane.xlu0 %1478
        %v1480 = vsel %vm423, %v1154, 0.0
        %1481 = vadd.xlane.f32.xlu0 %v1480
        %v1482 = vpop.xlane.xlu0 %1481
        %v1483 = vsel %vm423, %v1155, 0.0
        %1484 = vadd.xlane.f32.xlu0 %v1483
        %v1485 = vpop.xlane.xlu0 %1484
        %v1486 = vsel %vm423, %v1156, 0.0
        %1487 = vadd.xlane.f32.xlu0 %v1486
        %v1488 = vpop.xlane.xlu0 %1487
        %v1489 = vsel %vm423, %v1157, 0.0
        %1490 = vadd.xlane.f32.xlu0 %v1489
        %v1491 = vpop.xlane.xlu0 %1490
        %v1492 = vsel %vm423, %v1158, 0.0
        %1493 = vadd.xlane.f32.xlu0 %v1492
        %v1494 = vpop.xlane.xlu0 %1493
        %v1495 = vsel %vm423, %v1159, 0.0
        %1496 = vadd.xlane.f32.xlu0 %v1495
        %v1497 = vpop.xlane.xlu0 %1496
        %v1498 = vsel %vm423, %v1160, 0.0
        %1499 = vadd.xlane.f32.xlu0 %v1498
        %v1500 = vpop.xlane.xlu0 %1499
        %v1501 = vsel %vm423, %v1161, 0.0
        %1502 = vadd.xlane.f32.xlu0 %v1501
        %v1503 = vpop.xlane.xlu0 %1502
        %v1504 = vsel %vm423, %v1162, 0.0
        %1505 = vadd.xlane.f32.xlu0 %v1504
        %v1506 = vpop.xlane.xlu0 %1505
        %v1507 = vsel %vm423, %v1163, 0.0
        %1508 = vadd.xlane.f32.xlu0 %v1507
        %v1509 = vpop.xlane.xlu0 %1508
        %v1510 = vsel %vm423, %v1164, 0.0
        %1511 = vadd.xlane.f32.xlu0 %v1510
        %v1512 = vpop.xlane.xlu0 %1511
        %v1513 = vsel %vm423, %v1165, 0.0
        %1514 = vadd.xlane.f32.xlu0 %v1513
        %v1515 = vpop.xlane.xlu0 %1514
        %v1516 = vsel %vm423, %v1166, 0.0
        %1517 = vadd.xlane.f32.xlu0 %v1516
        %v1518 = vpop.xlane.xlu0 %1517
        %v1519 = vsel %vm423, %v1167, 0.0
        %1520 = vadd.xlane.f32.xlu0 %v1519
        %v1521 = vpop.xlane.xlu0 %1520
        %v1522 = vsel %vm423, %v1168, 0.0
        %1523 = vadd.xlane.f32.xlu0 %v1522
        %v1524 = vpop.xlane.xlu0 %1523
        %v1525 = vsel %vm423, %v1169, 0.0
        %1526 = vadd.xlane.f32.xlu0 %v1525
        %v1527 = vpop.xlane.xlu0 %1526
        %v1528 = vsel %vm423, %v1170, 0.0
        %1529 = vadd.xlane.f32.xlu0 %v1528
        %v1530 = vpop.xlane.xlu0 %1529
        %v1531 = vsel %vm423, %v1171, 0.0
        %1532 = vadd.xlane.f32.xlu0 %v1531
        %v1533 = vpop.xlane.xlu0 %1532
        %v1534 = vsel %vm423, %v1172, 0.0
        %1535 = vadd.xlane.f32.xlu0 %v1534
        %v1536 = vpop.xlane.xlu0 %1535
        %v1537 = vsel %vm423, %v1173, 0.0
        %1538 = vadd.xlane.f32.xlu0 %v1537
        %v1539 = vpop.xlane.xlu0 %1538
        %v1540 = vsel %vm423, %v1174, 0.0
        %1541 = vadd.xlane.f32.xlu0 %v1540
        %v1542 = vpop.xlane.xlu0 %1541
        %v1543 = vsel %vm423, %v1175, 0.0
        %1544 = vadd.xlane.f32.xlu0 %v1543
        %v1545 = vpop.xlane.xlu0 %1544
        %v1546 = vsel %vm423, %v1176, 0.0
        %1547 = vadd.xlane.f32.xlu0 %v1546
        %v1548 = vpop.xlane.xlu0 %1547
        %v1549 = vsel %vm423, %v1177, 0.0
        %1550 = vadd.xlane.f32.xlu0 %v1549
        %v1551 = vpop.xlane.xlu0 %1550
        %v1552 = vsel %vm423, %v1178, 0.0
        %1553 = vadd.xlane.f32.xlu0 %v1552
        %v1554 = vpop.xlane.xlu0 %1553
        %v1555 = vsel %vm423, %v1179, 0.0
        %1556 = vadd.xlane.f32.xlu0 %v1555
        %v1557 = vpop.xlane.xlu0 %1556
        %v1558 = vsel %vm423, %v1180, 0.0
        %1559 = vadd.xlane.f32.xlu0 %v1558
        %v1560 = vpop.xlane.xlu0 %1559
        %v1561 = vsel %vm423, %v1181, 0.0
        %1562 = vadd.xlane.f32.xlu0 %v1561
        %v1563 = vpop.xlane.xlu0 %1562
        %v1564 = vsel %vm423, %v1182, 0.0
        %1565 = vadd.xlane.f32.xlu0 %v1564
        %v1566 = vpop.xlane.xlu0 %1565
        %v1567 = vld [vmem:[%s395] sm:$0x1]
        %vm1568 = vcmp.lt.f32.partialorder %v1567, -5000.0
        %v1570 = vlaneseq
        %v1571 = vshrl.u32 %v1570, 7
        %v1572 = vsub.s32 0, %v1571
        %v1573 = vrot.slane %v1567, %v1572
        %1575 = vbcast.lane.b32.xlu0 %v1573, 256
        %v1576 = vpop.permute.xlu0 %1575
        %s1578 = sor.u32 256, 8
        %1579 = vbcast.lane.b32.xlu0 %v1573, %s1578
        %v1580 = vpop.permute.xlu0 %1579
        %s1582 = sor.u32 256, 16
        %1583 = vbcast.lane.b32.xlu0 %v1573, %s1582
        %v1584 = vpop.permute.xlu0 %1583
        %s1586 = sor.u32 256, 24
        %1587 = vbcast.lane.b32.xlu0 %v1573, %s1586
        %v1588 = vpop.permute.xlu0 %1587
        %s1590 = sor.u32 256, 32
        %1591 = vbcast.lane.b32.xlu0 %v1573, %s1590
        %v1592 = vpop.permute.xlu0 %1591
        %s1594 = sor.u32 256, 40
        %1595 = vbcast.lane.b32.xlu0 %v1573, %s1594
        %v1596 = vpop.permute.xlu0 %1595
        %s1598 = sor.u32 256, 48
        %1599 = vbcast.lane.b32.xlu0 %v1573, %s1598
        %v1600 = vpop.permute.xlu0 %1599
        %s1602 = sor.u32 256, 56
        %1603 = vbcast.lane.b32.xlu0 %v1573, %s1602
        %v1604 = vpop.permute.xlu0 %1603
        %s1606 = sor.u32 256, 64
        %1607 = vbcast.lane.b32.xlu0 %v1573, %s1606
        %v1608 = vpop.permute.xlu0 %1607
        %s1610 = sor.u32 256, 72
        %1611 = vbcast.lane.b32.xlu0 %v1573, %s1610
        %v1612 = vpop.permute.xlu0 %1611
        %s1614 = sor.u32 256, 80
        %1615 = vbcast.lane.b32.xlu0 %v1573, %s1614
        %v1616 = vpop.permute.xlu0 %1615
        %s1618 = sor.u32 256, 88
        %1619 = vbcast.lane.b32.xlu0 %v1573, %s1618
        %v1620 = vpop.permute.xlu0 %1619
        %s1622 = sor.u32 256, 96
        %1623 = vbcast.lane.b32.xlu0 %v1573, %s1622
        %v1624 = vpop.permute.xlu0 %1623
        %s1626 = sor.u32 256, 104
        %1627 = vbcast.lane.b32.xlu0 %v1573, %s1626
        %v1628 = vpop.permute.xlu0 %1627
        %s1630 = sor.u32 256, 112
        %1631 = vbcast.lane.b32.xlu0 %v1573, %s1630
        %v1632 = vpop.permute.xlu0 %1631
        %s1634 = sor.u32 256, 120
        %1635 = vbcast.lane.b32.xlu0 %v1573, %s1634
        %v1636 = vpop.permute.xlu0 %1635
        %v1653 = vadd.f32 %v1185, %v1576
        %v1654 = vadd.f32 %v1188, %v1580
        %v1655 = vadd.f32 %v1191, %v1584
        %v1656 = vadd.f32 %v1194, %v1588
        %v1657 = vadd.f32 %v1197, %v1592
        %v1658 = vadd.f32 %v1200, %v1596
        %v1659 = vadd.f32 %v1203, %v1600
        %v1660 = vadd.f32 %v1206, %v1604
        %v1661 = vadd.f32 %v1209, %v1608
        %v1662 = vadd.f32 %v1212, %v1612
        %v1663 = vadd.f32 %v1215, %v1616
        %v1664 = vadd.f32 %v1218, %v1620
        %v1665 = vadd.f32 %v1221, %v1624
        %v1666 = vadd.f32 %v1224, %v1628
        %v1667 = vadd.f32 %v1227, %v1632
        %v1668 = vadd.f32 %v1230, %v1636
        %v1669 = vadd.f32 %v1233, %v1576
        %v1670 = vadd.f32 %v1236, %v1580
        %v1671 = vadd.f32 %v1239, %v1584
        %v1672 = vadd.f32 %v1242, %v1588
        %v1673 = vadd.f32 %v1245, %v1592
        %v1674 = vadd.f32 %v1248, %v1596
        %v1675 = vadd.f32 %v1251, %v1600
        %v1676 = vadd.f32 %v1254, %v1604
        %v1677 = vadd.f32 %v1257, %v1608
        %v1678 = vadd.f32 %v1260, %v1612
        %v1679 = vadd.f32 %v1263, %v1616
        %v1680 = vadd.f32 %v1266, %v1620
        %v1681 = vadd.f32 %v1269, %v1624
        %v1682 = vadd.f32 %v1272, %v1628
        %v1683 = vadd.f32 %v1275, %v1632
        %v1684 = vadd.f32 %v1278, %v1636
        %v1685 = vadd.f32 %v1281, %v1576
        %v1686 = vadd.f32 %v1284, %v1580
        %v1687 = vadd.f32 %v1287, %v1584
        %v1688 = vadd.f32 %v1290, %v1588
        %v1689 = vadd.f32 %v1293, %v1592
        %v1690 = vadd.f32 %v1296, %v1596
        %v1691 = vadd.f32 %v1299, %v1600
        %v1692 = vadd.f32 %v1302, %v1604
        %v1693 = vadd.f32 %v1305, %v1608
        %v1694 = vadd.f32 %v1308, %v1612
        %v1695 = vadd.f32 %v1311, %v1616
        %v1696 = vadd.f32 %v1314, %v1620
        %v1697 = vadd.f32 %v1317, %v1624
        %v1698 = vadd.f32 %v1320, %v1628
        %v1699 = vadd.f32 %v1323, %v1632
        %v1700 = vadd.f32 %v1326, %v1636
        %v1701 = vadd.f32 %v1329, %v1576
        %v1702 = vadd.f32 %v1332, %v1580
        %v1703 = vadd.f32 %v1335, %v1584
        %v1704 = vadd.f32 %v1338, %v1588
        %v1705 = vadd.f32 %v1341, %v1592
        %v1706 = vadd.f32 %v1344, %v1596
        %v1707 = vadd.f32 %v1347, %v1600
        %v1708 = vadd.f32 %v1350, %v1604
        %v1709 = vadd.f32 %v1353, %v1608
        %v1710 = vadd.f32 %v1356, %v1612
        %v1711 = vadd.f32 %v1359, %v1616
        %v1712 = vadd.f32 %v1362, %v1620
        %v1713 = vadd.f32 %v1365, %v1624
        %v1714 = vadd.f32 %v1368, %v1628
        %v1715 = vadd.f32 %v1371, %v1632
        %v1716 = vadd.f32 %v1374, %v1636
        %v1717 = vadd.f32 %v1377, %v1576
        %v1718 = vadd.f32 %v1380, %v1580
        %v1719 = vadd.f32 %v1383, %v1584
        %v1720 = vadd.f32 %v1386, %v1588
        %v1721 = vadd.f32 %v1389, %v1592
        %v1722 = vadd.f32 %v1392, %v1596
        %v1723 = vadd.f32 %v1395, %v1600
        %v1724 = vadd.f32 %v1398, %v1604
        %v1725 = vadd.f32 %v1401, %v1608
        %v1726 = vadd.f32 %v1404, %v1612
        %v1727 = vadd.f32 %v1407, %v1616
        %v1728 = vadd.f32 %v1410, %v1620
        %v1729 = vadd.f32 %v1413, %v1624
        %v1730 = vadd.f32 %v1416, %v1628
        %v1731 = vadd.f32 %v1419, %v1632
        %v1732 = vadd.f32 %v1422, %v1636
        %v1733 = vadd.f32 %v1425, %v1576
        %v1734 = vadd.f32 %v1428, %v1580
        %v1735 = vadd.f32 %v1431, %v1584
        %v1736 = vadd.f32 %v1434, %v1588
        %v1737 = vadd.f32 %v1437, %v1592
        %v1738 = vadd.f32 %v1440, %v1596
        %v1739 = vadd.f32 %v1443, %v1600
        %v1740 = vadd.f32 %v1446, %v1604
        %v1741 = vadd.f32 %v1449, %v1608
        %v1742 = vadd.f32 %v1452, %v1612
        %v1743 = vadd.f32 %v1455, %v1616
        %v1744 = vadd.f32 %v1458, %v1620
        %v1745 = vadd.f32 %v1461, %v1624
        %v1746 = vadd.f32 %v1464, %v1628
        %v1747 = vadd.f32 %v1467, %v1632
        %v1748 = vadd.f32 %v1470, %v1636
        %v1749 = vadd.f32 %v1473, %v1576
        %v1750 = vadd.f32 %v1476, %v1580
        %v1751 = vadd.f32 %v1479, %v1584
        %v1752 = vadd.f32 %v1482, %v1588
        %v1753 = vadd.f32 %v1485, %v1592
        %v1754 = vadd.f32 %v1488, %v1596
        %v1755 = vadd.f32 %v1491, %v1600
        %v1756 = vadd.f32 %v1494, %v1604
        %v1757 = vadd.f32 %v1497, %v1608
        %v1758 = vadd.f32 %v1500, %v1612
        %v1759 = vadd.f32 %v1503, %v1616
        %v1760 = vadd.f32 %v1506, %v1620
        %v1761 = vadd.f32 %v1509, %v1624
        %v1762 = vadd.f32 %v1512, %v1628
        %v1763 = vadd.f32 %v1515, %v1632
        %v1764 = vadd.f32 %v1518, %v1636
        %v1765 = vadd.f32 %v1521, %v1576
        %v1766 = vadd.f32 %v1524, %v1580
        %v1767 = vadd.f32 %v1527, %v1584
        %v1768 = vadd.f32 %v1530, %v1588
        %v1769 = vadd.f32 %v1533, %v1592
        %v1770 = vadd.f32 %v1536, %v1596
        %v1771 = vadd.f32 %v1539, %v1600
        %v1772 = vadd.f32 %v1542, %v1604
        %v1773 = vadd.f32 %v1545, %v1608
        %v1774 = vadd.f32 %v1548, %v1612
        %v1775 = vadd.f32 %v1551, %v1616
        %v1776 = vadd.f32 %v1554, %v1620
        %v1777 = vadd.f32 %v1557, %v1624
        %v1778 = vadd.f32 %v1560, %v1628
        %v1779 = vadd.f32 %v1563, %v1632
        %v1780 = vadd.f32 %v1566, %v1636
        %v1781 = vsel %vm1568, 1, 0
        %v1782 = vlaneseq
        %v1783 = vshrl.u32 %v1782, 7
        %v1784 = vsub.s32 0, %v1783
        %v1785 = vrot.slane %v1781, %v1784
        %vm1786 = vcmp.eq.s32.totalorder %v1785, 1
        %1915 = vset.pattern.permute.xlu0 0
        %1916 = vperm.xlu0 %1915, %v1653
        %v1917 = vpop.permute.xlu0 %1916
        %1918 = vset.pattern.permute.xlu0 0
        %1919 = vperm.xlu0 %1918, %v1654
        %v1920 = vpop.permute.xlu0 %1919
        %1921 = vset.pattern.permute.xlu0 0
        %1922 = vperm.xlu0 %1921, %v1655
        %v1923 = vpop.permute.xlu0 %1922
        %1924 = vset.pattern.permute.xlu0 0
        %1925 = vperm.xlu0 %1924, %v1656
        %v1926 = vpop.permute.xlu0 %1925
        %1927 = vset.pattern.permute.xlu0 0
        %1928 = vperm.xlu0 %1927, %v1657
        %v1929 = vpop.permute.xlu0 %1928
        %1930 = vset.pattern.permute.xlu0 0
        %1931 = vperm.xlu0 %1930, %v1658
        %v1932 = vpop.permute.xlu0 %1931
        %1933 = vset.pattern.permute.xlu0 0
        %1934 = vperm.xlu0 %1933, %v1659
        %v1935 = vpop.permute.xlu0 %1934
        %1936 = vset.pattern.permute.xlu0 0
        %1937 = vperm.xlu0 %1936, %v1660
        %v1938 = vpop.permute.xlu0 %1937
        %1939 = vset.pattern.permute.xlu0 0
        %1940 = vperm.xlu0 %1939, %v1661
        %v1941 = vpop.permute.xlu0 %1940
        %1942 = vset.pattern.permute.xlu0 0
        %1943 = vperm.xlu0 %1942, %v1662
        %v1944 = vpop.permute.xlu0 %1943
        %1945 = vset.pattern.permute.xlu0 0
        %1946 = vperm.xlu0 %1945, %v1663
        %v1947 = vpop.permute.xlu0 %1946
        %1948 = vset.pattern.permute.xlu0 0
        %1949 = vperm.xlu0 %1948, %v1664
        %v1950 = vpop.permute.xlu0 %1949
        %1951 = vset.pattern.permute.xlu0 0
        %1952 = vperm.xlu0 %1951, %v1665
        %v1953 = vpop.permute.xlu0 %1952
        %1954 = vset.pattern.permute.xlu0 0
        %1955 = vperm.xlu0 %1954, %v1666
        %v1956 = vpop.permute.xlu0 %1955
        %1957 = vset.pattern.permute.xlu0 0
        %1958 = vperm.xlu0 %1957, %v1667
        %v1959 = vpop.permute.xlu0 %1958
        %1960 = vset.pattern.permute.xlu0 0
        %1961 = vperm.xlu0 %1960, %v1668
        %v1962 = vpop.permute.xlu0 %1961
        %1963 = vset.pattern.permute.xlu0 0
        %1964 = vperm.xlu0 %1963, %v1669
        %v1965 = vpop.permute.xlu0 %1964
        %1966 = vset.pattern.permute.xlu0 0
        %1967 = vperm.xlu0 %1966, %v1670
        %v1968 = vpop.permute.xlu0 %1967
        %1969 = vset.pattern.permute.xlu0 0
        %1970 = vperm.xlu0 %1969, %v1671
        %v1971 = vpop.permute.xlu0 %1970
        %1972 = vset.pattern.permute.xlu0 0
        %1973 = vperm.xlu0 %1972, %v1672
        %v1974 = vpop.permute.xlu0 %1973
        %1975 = vset.pattern.permute.xlu0 0
        %1976 = vperm.xlu0 %1975, %v1673
        %v1977 = vpop.permute.xlu0 %1976
        %1978 = vset.pattern.permute.xlu0 0
        %1979 = vperm.xlu0 %1978, %v1674
        %v1980 = vpop.permute.xlu0 %1979
        %1981 = vset.pattern.permute.xlu0 0
        %1982 = vperm.xlu0 %1981, %v1675
        %v1983 = vpop.permute.xlu0 %1982
        %1984 = vset.pattern.permute.xlu0 0
        %1985 = vperm.xlu0 %1984, %v1676
        %v1986 = vpop.permute.xlu0 %1985
        %1987 = vset.pattern.permute.xlu0 0
        %1988 = vperm.xlu0 %1987, %v1677
        %v1989 = vpop.permute.xlu0 %1988
        %1990 = vset.pattern.permute.xlu0 0
        %1991 = vperm.xlu0 %1990, %v1678
        %v1992 = vpop.permute.xlu0 %1991
        %1993 = vset.pattern.permute.xlu0 0
        %1994 = vperm.xlu0 %1993, %v1679
        %v1995 = vpop.permute.xlu0 %1994
        %1996 = vset.pattern.permute.xlu0 0
        %1997 = vperm.xlu0 %1996, %v1680
        %v1998 = vpop.permute.xlu0 %1997
        %1999 = vset.pattern.permute.xlu0 0
        %2000 = vperm.xlu0 %1999, %v1681
        %v2001 = vpop.permute.xlu0 %2000
        %2002 = vset.pattern.permute.xlu0 0
        %2003 = vperm.xlu0 %2002, %v1682
        %v2004 = vpop.permute.xlu0 %2003
        %2005 = vset.pattern.permute.xlu0 0
        %2006 = vperm.xlu0 %2005, %v1683
        %v2007 = vpop.permute.xlu0 %2006
        %2008 = vset.pattern.permute.xlu0 0
        %2009 = vperm.xlu0 %2008, %v1684
        %v2010 = vpop.permute.xlu0 %2009
        %2011 = vset.pattern.permute.xlu0 0
        %2012 = vperm.xlu0 %2011, %v1685
        %v2013 = vpop.permute.xlu0 %2012
        %2014 = vset.pattern.permute.xlu0 0
        %2015 = vperm.xlu0 %2014, %v1686
        %v2016 = vpop.permute.xlu0 %2015
        %2017 = vset.pattern.permute.xlu0 0
        %2018 = vperm.xlu0 %2017, %v1687
        %v2019 = vpop.permute.xlu0 %2018
        %2020 = vset.pattern.permute.xlu0 0
        %2021 = vperm.xlu0 %2020, %v1688
        %v2022 = vpop.permute.xlu0 %2021
        %2023 = vset.pattern.permute.xlu0 0
        %2024 = vperm.xlu0 %2023, %v1689
        %v2025 = vpop.permute.xlu0 %2024
        %2026 = vset.pattern.permute.xlu0 0
        %2027 = vperm.xlu0 %2026, %v1690
        %v2028 = vpop.permute.xlu0 %2027
        %2029 = vset.pattern.permute.xlu0 0
        %2030 = vperm.xlu0 %2029, %v1691
        %v2031 = vpop.permute.xlu0 %2030
        %2032 = vset.pattern.permute.xlu0 0
        %2033 = vperm.xlu0 %2032, %v1692
        %v2034 = vpop.permute.xlu0 %2033
        %2035 = vset.pattern.permute.xlu0 0
        %2036 = vperm.xlu0 %2035, %v1693
        %v2037 = vpop.permute.xlu0 %2036
        %2038 = vset.pattern.permute.xlu0 0
        %2039 = vperm.xlu0 %2038, %v1694
        %v2040 = vpop.permute.xlu0 %2039
        %2041 = vset.pattern.permute.xlu0 0
        %2042 = vperm.xlu0 %2041, %v1695
        %v2043 = vpop.permute.xlu0 %2042
        %2044 = vset.pattern.permute.xlu0 0
        %2045 = vperm.xlu0 %2044, %v1696
        %v2046 = vpop.permute.xlu0 %2045
        %2047 = vset.pattern.permute.xlu0 0
        %2048 = vperm.xlu0 %2047, %v1697
        %v2049 = vpop.permute.xlu0 %2048
        %2050 = vset.pattern.permute.xlu0 0
        %2051 = vperm.xlu0 %2050, %v1698
        %v2052 = vpop.permute.xlu0 %2051
        %2053 = vset.pattern.permute.xlu0 0
        %2054 = vperm.xlu0 %2053, %v1699
        %v2055 = vpop.permute.xlu0 %2054
        %2056 = vset.pattern.permute.xlu0 0
        %2057 = vperm.xlu0 %2056, %v1700
        %v2058 = vpop.permute.xlu0 %2057
        %2059 = vset.pattern.permute.xlu0 0
        %2060 = vperm.xlu0 %2059, %v1701
        %v2061 = vpop.permute.xlu0 %2060
        %2062 = vset.pattern.permute.xlu0 0
        %2063 = vperm.xlu0 %2062, %v1702
        %v2064 = vpop.permute.xlu0 %2063
        %2065 = vset.pattern.permute.xlu0 0
        %2066 = vperm.xlu0 %2065, %v1703
        %v2067 = vpop.permute.xlu0 %2066
        %2068 = vset.pattern.permute.xlu0 0
        %2069 = vperm.xlu0 %2068, %v1704
        %v2070 = vpop.permute.xlu0 %2069
        %2071 = vset.pattern.permute.xlu0 0
        %2072 = vperm.xlu0 %2071, %v1705
        %v2073 = vpop.permute.xlu0 %2072
        %2074 = vset.pattern.permute.xlu0 0
        %2075 = vperm.xlu0 %2074, %v1706
        %v2076 = vpop.permute.xlu0 %2075
        %2077 = vset.pattern.permute.xlu0 0
        %2078 = vperm.xlu0 %2077, %v1707
        %v2079 = vpop.permute.xlu0 %2078
        %2080 = vset.pattern.permute.xlu0 0
        %2081 = vperm.xlu0 %2080, %v1708
        %v2082 = vpop.permute.xlu0 %2081
        %2083 = vset.pattern.permute.xlu0 0
        %2084 = vperm.xlu0 %2083, %v1709
        %v2085 = vpop.permute.xlu0 %2084
        %2086 = vset.pattern.permute.xlu0 0
        %2087 = vperm.xlu0 %2086, %v1710
        %v2088 = vpop.permute.xlu0 %2087
        %2089 = vset.pattern.permute.xlu0 0
        %2090 = vperm.xlu0 %2089, %v1711
        %v2091 = vpop.permute.xlu0 %2090
        %2092 = vset.pattern.permute.xlu0 0
        %2093 = vperm.xlu0 %2092, %v1712
        %v2094 = vpop.permute.xlu0 %2093
        %2095 = vset.pattern.permute.xlu0 0
        %2096 = vperm.xlu0 %2095, %v1713
        %v2097 = vpop.permute.xlu0 %2096
        %2098 = vset.pattern.permute.xlu0 0
        %2099 = vperm.xlu0 %2098, %v1714
        %v2100 = vpop.permute.xlu0 %2099
        %2101 = vset.pattern.permute.xlu0 0
        %2102 = vperm.xlu0 %2101, %v1715
        %v2103 = vpop.permute.xlu0 %2102
        %2104 = vset.pattern.permute.xlu0 0
        %2105 = vperm.xlu0 %2104, %v1716
        %v2106 = vpop.permute.xlu0 %2105
        %2107 = vset.pattern.permute.xlu0 0
        %2108 = vperm.xlu0 %2107, %v1717
        %v2109 = vpop.permute.xlu0 %2108
        %2110 = vset.pattern.permute.xlu0 0
        %2111 = vperm.xlu0 %2110, %v1718
        %v2112 = vpop.permute.xlu0 %2111
        %2113 = vset.pattern.permute.xlu0 0
        %2114 = vperm.xlu0 %2113, %v1719
        %v2115 = vpop.permute.xlu0 %2114
        %2116 = vset.pattern.permute.xlu0 0
        %2117 = vperm.xlu0 %2116, %v1720
        %v2118 = vpop.permute.xlu0 %2117
        %2119 = vset.pattern.permute.xlu0 0
        %2120 = vperm.xlu0 %2119, %v1721
        %v2121 = vpop.permute.xlu0 %2120
        %2122 = vset.pattern.permute.xlu0 0
        %2123 = vperm.xlu0 %2122, %v1722
        %v2124 = vpop.permute.xlu0 %2123
        %2125 = vset.pattern.permute.xlu0 0
        %2126 = vperm.xlu0 %2125, %v1723
        %v2127 = vpop.permute.xlu0 %2126
        %2128 = vset.pattern.permute.xlu0 0
        %2129 = vperm.xlu0 %2128, %v1724
        %v2130 = vpop.permute.xlu0 %2129
        %2131 = vset.pattern.permute.xlu0 0
        %2132 = vperm.xlu0 %2131, %v1725
        %v2133 = vpop.permute.xlu0 %2132
        %2134 = vset.pattern.permute.xlu0 0
        %2135 = vperm.xlu0 %2134, %v1726
        %v2136 = vpop.permute.xlu0 %2135
        %2137 = vset.pattern.permute.xlu0 0
        %2138 = vperm.xlu0 %2137, %v1727
        %v2139 = vpop.permute.xlu0 %2138
        %2140 = vset.pattern.permute.xlu0 0
        %2141 = vperm.xlu0 %2140, %v1728
        %v2142 = vpop.permute.xlu0 %2141
        %2143 = vset.pattern.permute.xlu0 0
        %2144 = vperm.xlu0 %2143, %v1729
        %v2145 = vpop.permute.xlu0 %2144
        %2146 = vset.pattern.permute.xlu0 0
        %2147 = vperm.xlu0 %2146, %v1730
        %v2148 = vpop.permute.xlu0 %2147
        %2149 = vset.pattern.permute.xlu0 0
        %2150 = vperm.xlu0 %2149, %v1731
        %v2151 = vpop.permute.xlu0 %2150
        %2152 = vset.pattern.permute.xlu0 0
        %2153 = vperm.xlu0 %2152, %v1732
        %v2154 = vpop.permute.xlu0 %2153
        %2155 = vset.pattern.permute.xlu0 0
        %2156 = vperm.xlu0 %2155, %v1733
        %v2157 = vpop.permute.xlu0 %2156
        %2158 = vset.pattern.permute.xlu0 0
        %2159 = vperm.xlu0 %2158, %v1734
        %v2160 = vpop.permute.xlu0 %2159
        %2161 = vset.pattern.permute.xlu0 0
        %2162 = vperm.xlu0 %2161, %v1735
        %v2163 = vpop.permute.xlu0 %2162
        %2164 = vset.pattern.permute.xlu0 0
        %2165 = vperm.xlu0 %2164, %v1736
        %v2166 = vpop.permute.xlu0 %2165
        %2167 = vset.pattern.permute.xlu0 0
        %2168 = vperm.xlu0 %2167, %v1737
        %v2169 = vpop.permute.xlu0 %2168
        %2170 = vset.pattern.permute.xlu0 0
        %2171 = vperm.xlu0 %2170, %v1738
        %v2172 = vpop.permute.xlu0 %2171
        %2173 = vset.pattern.permute.xlu0 0
        %2174 = vperm.xlu0 %2173, %v1739
        %v2175 = vpop.permute.xlu0 %2174
        %2176 = vset.pattern.permute.xlu0 0
        %2177 = vperm.xlu0 %2176, %v1740
        %v2178 = vpop.permute.xlu0 %2177
        %2179 = vset.pattern.permute.xlu0 0
        %2180 = vperm.xlu0 %2179, %v1741
        %v2181 = vpop.permute.xlu0 %2180
        %2182 = vset.pattern.permute.xlu0 0
        %2183 = vperm.xlu0 %2182, %v1742
        %v2184 = vpop.permute.xlu0 %2183
        %2185 = vset.pattern.permute.xlu0 0
        %2186 = vperm.xlu0 %2185, %v1743
        %v2187 = vpop.permute.xlu0 %2186
        %2188 = vset.pattern.permute.xlu0 0
        %2189 = vperm.xlu0 %2188, %v1744
        %v2190 = vpop.permute.xlu0 %2189
        %2191 = vset.pattern.permute.xlu0 0
        %2192 = vperm.xlu0 %2191, %v1745
        %v2193 = vpop.permute.xlu0 %2192
        %2194 = vset.pattern.permute.xlu0 0
        %2195 = vperm.xlu0 %2194, %v1746
        %v2196 = vpop.permute.xlu0 %2195
        %2197 = vset.pattern.permute.xlu0 0
        %2198 = vperm.xlu0 %2197, %v1747
        %v2199 = vpop.permute.xlu0 %2198
        %2200 = vset.pattern.permute.xlu0 0
        %2201 = vperm.xlu0 %2200, %v1748
        %v2202 = vpop.permute.xlu0 %2201
        %2203 = vset.pattern.permute.xlu0 0
        %2204 = vperm.xlu0 %2203, %v1749
        %v2205 = vpop.permute.xlu0 %2204
        %2206 = vset.pattern.permute.xlu0 0
        %2207 = vperm.xlu0 %2206, %v1750
        %v2208 = vpop.permute.xlu0 %2207
        %2209 = vset.pattern.permute.xlu0 0
        %2210 = vperm.xlu0 %2209, %v1751
        %v2211 = vpop.permute.xlu0 %2210
        %2212 = vset.pattern.permute.xlu0 0
        %2213 = vperm.xlu0 %2212, %v1752
        %v2214 = vpop.permute.xlu0 %2213
        %2215 = vset.pattern.permute.xlu0 0
        %2216 = vperm.xlu0 %2215, %v1753
        %v2217 = vpop.permute.xlu0 %2216
        %2218 = vset.pattern.permute.xlu0 0
        %2219 = vperm.xlu0 %2218, %v1754
        %v2220 = vpop.permute.xlu0 %2219
        %2221 = vset.pattern.permute.xlu0 0
        %2222 = vperm.xlu0 %2221, %v1755
        %v2223 = vpop.permute.xlu0 %2222
        %2224 = vset.pattern.permute.xlu0 0
        %2225 = vperm.xlu0 %2224, %v1756
        %v2226 = vpop.permute.xlu0 %2225
        %2227 = vset.pattern.permute.xlu0 0
        %2228 = vperm.xlu0 %2227, %v1757
        %v2229 = vpop.permute.xlu0 %2228
        %2230 = vset.pattern.permute.xlu0 0
        %2231 = vperm.xlu0 %2230, %v1758
        %v2232 = vpop.permute.xlu0 %2231
        %2233 = vset.pattern.permute.xlu0 0
        %2234 = vperm.xlu0 %2233, %v1759
        %v2235 = vpop.permute.xlu0 %2234
        %2236 = vset.pattern.permute.xlu0 0
        %2237 = vperm.xlu0 %2236, %v1760
        %v2238 = vpop.permute.xlu0 %2237
        %2239 = vset.pattern.permute.xlu0 0
        %2240 = vperm.xlu0 %2239, %v1761
        %v2241 = vpop.permute.xlu0 %2240
        %2242 = vset.pattern.permute.xlu0 0
        %2243 = vperm.xlu0 %2242, %v1762
        %v2244 = vpop.permute.xlu0 %2243
        %2245 = vset.pattern.permute.xlu0 0
        %2246 = vperm.xlu0 %2245, %v1763
        %v2247 = vpop.permute.xlu0 %2246
        %2248 = vset.pattern.permute.xlu0 0
        %2249 = vperm.xlu0 %2248, %v1764
        %v2250 = vpop.permute.xlu0 %2249
        %2251 = vset.pattern.permute.xlu0 0
        %2252 = vperm.xlu0 %2251, %v1765
        %v2253 = vpop.permute.xlu0 %2252
        %2254 = vset.pattern.permute.xlu0 0
        %2255 = vperm.xlu0 %2254, %v1766
        %v2256 = vpop.permute.xlu0 %2255
        %2257 = vset.pattern.permute.xlu0 0
        %2258 = vperm.xlu0 %2257, %v1767
        %v2259 = vpop.permute.xlu0 %2258
        %2260 = vset.pattern.permute.xlu0 0
        %2261 = vperm.xlu0 %2260, %v1768
        %v2262 = vpop.permute.xlu0 %2261
        %2263 = vset.pattern.permute.xlu0 0
        %2264 = vperm.xlu0 %2263, %v1769
        %v2265 = vpop.permute.xlu0 %2264
        %2266 = vset.pattern.permute.xlu0 0
        %2267 = vperm.xlu0 %2266, %v1770
        %v2268 = vpop.permute.xlu0 %2267
        %2269 = vset.pattern.permute.xlu0 0
        %2270 = vperm.xlu0 %2269, %v1771
        %v2271 = vpop.permute.xlu0 %2270
        %2272 = vset.pattern.permute.xlu0 0
        %2273 = vperm.xlu0 %2272, %v1772
        %v2274 = vpop.permute.xlu0 %2273
        %2275 = vset.pattern.permute.xlu0 0
        %2276 = vperm.xlu0 %2275, %v1773
        %v2277 = vpop.permute.xlu0 %2276
        %2278 = vset.pattern.permute.xlu0 0
        %2279 = vperm.xlu0 %2278, %v1774
        %v2280 = vpop.permute.xlu0 %2279
        %2281 = vset.pattern.permute.xlu0 0
        %2282 = vperm.xlu0 %2281, %v1775
        %v2283 = vpop.permute.xlu0 %2282
        %2284 = vset.pattern.permute.xlu0 0
        %2285 = vperm.xlu0 %2284, %v1776
        %v2286 = vpop.permute.xlu0 %2285
        %2287 = vset.pattern.permute.xlu0 0
        %2288 = vperm.xlu0 %2287, %v1777
        %v2289 = vpop.permute.xlu0 %2288
        %2290 = vset.pattern.permute.xlu0 0
        %2291 = vperm.xlu0 %2290, %v1778
        %v2292 = vpop.permute.xlu0 %2291
        %2293 = vset.pattern.permute.xlu0 0
        %2294 = vperm.xlu0 %2293, %v1779
        %v2295 = vpop.permute.xlu0 %2294
        %2296 = vset.pattern.permute.xlu0 0
        %2297 = vperm.xlu0 %2296, %v1780
        %v2298 = vpop.permute.xlu0 %2297
        %v2299 = vlaneseq
        %v2300 = vand.u32 %v2299, 127
        %v2301 = vlaneseq
        %v2302 = vshrl.u32 %v2301, 7
        %v2303 = vsub.s32 %v2300, %v2302
        %v2304 = vrot.slane %v1917, %v2303
        %v2305 = vadd.s32 %v2300, 4294967288
        %v2306 = vlaneseq
        %v2307 = vshrl.u32 %v2306, 7
        %v2308 = vsub.s32 %v2305, %v2307
        %v2309 = vrot.slane %v1920, %v2308
        %vm2310 = vcmask 130112
        %v2311 = vsel %vm2310, %v2309, %v2304
        %v2312 = vadd.s32 %v2300, 4294967280
        %v2313 = vlaneseq
        %v2314 = vshrl.u32 %v2313, 7
        %v2315 = vsub.s32 %v2312, %v2314
        %v2316 = vrot.slane %v1923, %v2315
        %vm2317 = vcmask 195712
        %v2318 = vsel %vm2317, %v2316, %v2311
        %v2319 = vadd.s32 %v2300, 4294967272
        %v2320 = vlaneseq
        %v2321 = vshrl.u32 %v2320, 7
        %v2322 = vsub.s32 %v2319, %v2321
        %v2323 = vrot.slane %v1926, %v2322
        %vm2324 = vcmask 261312
        %v2325 = vsel %vm2324, %v2323, %v2318
        %v2326 = vadd.s32 %v2300, 4294967264
        %v2327 = vlaneseq
        %v2328 = vshrl.u32 %v2327, 7
        %v2329 = vsub.s32 %v2326, %v2328
        %v2330 = vrot.slane %v1929, %v2329
        %vm2331 = vcmask 326912
        %v2332 = vsel %vm2331, %v2330, %v2325
        %v2333 = vadd.s32 %v2300, 4294967256
        %v2334 = vlaneseq
        %v2335 = vshrl.u32 %v2334, 7
        %v2336 = vsub.s32 %v2333, %v2335
        %v2337 = vrot.slane %v1932, %v2336
        %vm2338 = vcmask 392512
        %v2339 = vsel %vm2338, %v2337, %v2332
        %v2340 = vadd.s32 %v2300, 4294967248
        %v2341 = vlaneseq
        %v2342 = vshrl.u32 %v2341, 7
        %v2343 = vsub.s32 %v2340, %v2342
        %v2344 = vrot.slane %v1935, %v2343
        %vm2345 = vcmask 458112
        %v2346 = vsel %vm2345, %v2344, %v2339
        %v2347 = vadd.s32 %v2300, 4294967240
        %v2348 = vlaneseq
        %v2349 = vshrl.u32 %v2348, 7
        %v2350 = vsub.s32 %v2347, %v2349
        %v2351 = vrot.slane %v1938, %v2350
        %vm2352 = vcmask 523712
        %v2353 = vsel %vm2352, %v2351, %v2346
        %v2354 = vadd.s32 %v2300, 4294967232
        %v2355 = vlaneseq
        %v2356 = vshrl.u32 %v2355, 7
        %v2357 = vsub.s32 %v2354, %v2356
        %v2358 = vrot.slane %v1941, %v2357
        %vm2359 = vcmask 589312
        %v2360 = vsel %vm2359, %v2358, %v2353
        %v2361 = vadd.s32 %v2300, 4294967224
        %v2362 = vlaneseq
        %v2363 = vshrl.u32 %v2362, 7
        %v2364 = vsub.s32 %v2361, %v2363
        %v2365 = vrot.slane %v1944, %v2364
        %vm2366 = vcmask 654912
        %v2367 = vsel %vm2366, %v2365, %v2360
        %v2368 = vadd.s32 %v2300, 4294967216
        %v2369 = vlaneseq
        %v2370 = vshrl.u32 %v2369, 7
        %v2371 = vsub.s32 %v2368, %v2370
        %v2372 = vrot.slane %v1947, %v2371
        %vm2373 = vcmask 720512
        %v2374 = vsel %vm2373, %v2372, %v2367
        %v2375 = vadd.s32 %v2300, 4294967208
        %v2376 = vlaneseq
        %v2377 = vshrl.u32 %v2376, 7
        %v2378 = vsub.s32 %v2375, %v2377
        %v2379 = vrot.slane %v1950, %v2378
        %vm2380 = vcmask 786112
        %v2381 = vsel %vm2380, %v2379, %v2374
        %v2382 = vadd.s32 %v2300, 4294967200
        %v2383 = vlaneseq
        %v2384 = vshrl.u32 %v2383, 7
        %v2385 = vsub.s32 %v2382, %v2384
        %v2386 = vrot.slane %v1953, %v2385
        %vm2387 = vcmask 851712
        %v2388 = vsel %vm2387, %v2386, %v2381
        %v2389 = vadd.s32 %v2300, 4294967192
        %v2390 = vlaneseq
        %v2391 = vshrl.u32 %v2390, 7
        %v2392 = vsub.s32 %v2389, %v2391
        %v2393 = vrot.slane %v1956, %v2392
        %vm2394 = vcmask 917312
        %v2395 = vsel %vm2394, %v2393, %v2388
        %v2396 = vadd.s32 %v2300, 4294967184
        %v2397 = vlaneseq
        %v2398 = vshrl.u32 %v2397, 7
        %v2399 = vsub.s32 %v2396, %v2398
        %v2400 = vrot.slane %v1959, %v2399
        %vm2401 = vcmask 982912
        %v2402 = vsel %vm2401, %v2400, %v2395
        %v2403 = vadd.s32 %v2300, 4294967176
        %v2404 = vlaneseq
        %v2405 = vshrl.u32 %v2404, 7
        %v2406 = vsub.s32 %v2403, %v2405
        %v2407 = vrot.slane %v1962, %v2406
        %vm2408 = vcmask 1048512
        %v2409 = vsel %vm2408, %v2407, %v2402
        %v2410 = vlaneseq
        %v2411 = vshrl.u32 %v2410, 7
        %v2412 = vsub.s32 %v2300, %v2411
        %v2413 = vrot.slane %v1965, %v2412
        %v2414 = vlaneseq
        %v2415 = vshrl.u32 %v2414, 7
        %v2416 = vsub.s32 %v2305, %v2415
        %v2417 = vrot.slane %v1968, %v2416
        %v2418 = vsel %vm2310, %v2417, %v2413
        %v2419 = vlaneseq
        %v2420 = vshrl.u32 %v2419, 7
        %v2421 = vsub.s32 %v2312, %v2420
        %v2422 = vrot.slane %v1971, %v2421
        %v2423 = vsel %vm2317, %v2422, %v2418
        %v2424 = vlaneseq
        %v2425 = vshrl.u32 %v2424, 7
        %v2426 = vsub.s32 %v2319, %v2425
        %v2427 = vrot.slane %v1974, %v2426
        %v2428 = vsel %vm2324, %v2427, %v2423
        %v2429 = vlaneseq
        %v2430 = vshrl.u32 %v2429, 7
        %v2431 = vsub.s32 %v2326, %v2430
        %v2432 = vrot.slane %v1977, %v2431
        %v2433 = vsel %vm2331, %v2432, %v2428
        %v2434 = vlaneseq
        %v2435 = vshrl.u32 %v2434, 7
        %v2436 = vsub.s32 %v2333, %v2435
        %v2437 = vrot.slane %v1980, %v2436
        %v2438 = vsel %vm2338, %v2437, %v2433
        %v2439 = vlaneseq
        %v2440 = vshrl.u32 %v2439, 7
        %v2441 = vsub.s32 %v2340, %v2440
        %v2442 = vrot.slane %v1983, %v2441
        %v2443 = vsel %vm2345, %v2442, %v2438
        %v2444 = vlaneseq
        %v2445 = vshrl.u32 %v2444, 7
        %v2446 = vsub.s32 %v2347, %v2445
        %v2447 = vrot.slane %v1986, %v2446
        %v2448 = vsel %vm2352, %v2447, %v2443
        %v2449 = vlaneseq
        %v2450 = vshrl.u32 %v2449, 7
        %v2451 = vsub.s32 %v2354, %v2450
        %v2452 = vrot.slane %v1989, %v2451
        %v2453 = vsel %vm2359, %v2452, %v2448
        %v2454 = vlaneseq
        %v2455 = vshrl.u32 %v2454, 7
        %v2456 = vsub.s32 %v2361, %v2455
        %v2457 = vrot.slane %v1992, %v2456
        %v2458 = vsel %vm2366, %v2457, %v2453
        %v2459 = vlaneseq
        %v2460 = vshrl.u32 %v2459, 7
        %v2461 = vsub.s32 %v2368, %v2460
        %v2462 = vrot.slane %v1995, %v2461
        %v2463 = vsel %vm2373, %v2462, %v2458
        %v2464 = vlaneseq
        %v2465 = vshrl.u32 %v2464, 7
        %v2466 = vsub.s32 %v2375, %v2465
        %v2467 = vrot.slane %v1998, %v2466
        %v2468 = vsel %vm2380, %v2467, %v2463
        %v2469 = vlaneseq
        %v2470 = vshrl.u32 %v2469, 7
        %v2471 = vsub.s32 %v2382, %v2470
        %v2472 = vrot.slane %v2001, %v2471
        %v2473 = vsel %vm2387, %v2472, %v2468
        %v2474 = vlaneseq
        %v2475 = vshrl.u32 %v2474, 7
        %v2476 = vsub.s32 %v2389, %v2475
        %v2477 = vrot.slane %v2004, %v2476
        %v2478 = vsel %vm2394, %v2477, %v2473
        %v2479 = vlaneseq
        %v2480 = vshrl.u32 %v2479, 7
        %v2481 = vsub.s32 %v2396, %v2480
        %v2482 = vrot.slane %v2007, %v2481
        %v2483 = vsel %vm2401, %v2482, %v2478
        %v2484 = vlaneseq
        %v2485 = vshrl.u32 %v2484, 7
        %v2486 = vsub.s32 %v2403, %v2485
        %v2487 = vrot.slane %v2010, %v2486
        %v2488 = vsel %vm2408, %v2487, %v2483
        %v2489 = vlaneseq
        %v2490 = vshrl.u32 %v2489, 7
        %v2491 = vsub.s32 %v2300, %v2490
        %v2492 = vrot.slane %v2013, %v2491
        %v2493 = vlaneseq
        %v2494 = vshrl.u32 %v2493, 7
        %v2495 = vsub.s32 %v2305, %v2494
        %v2496 = vrot.slane %v2016, %v2495
        %v2497 = vsel %vm2310, %v2496, %v2492
        %v2498 = vlaneseq
        %v2499 = vshrl.u32 %v2498, 7
        %v2500 = vsub.s32 %v2312, %v2499
        %v2501 = vrot.slane %v2019, %v2500
        %v2502 = vsel %vm2317, %v2501, %v2497
        %v2503 = vlaneseq
        %v2504 = vshrl.u32 %v2503, 7
        %v2505 = vsub.s32 %v2319, %v2504
        %v2506 = vrot.slane %v2022, %v2505
        %v2507 = vsel %vm2324, %v2506, %v2502
        %v2508 = vlaneseq
        %v2509 = vshrl.u32 %v2508, 7
        %v2510 = vsub.s32 %v2326, %v2509
        %v2511 = vrot.slane %v2025, %v2510
        %v2512 = vsel %vm2331, %v2511, %v2507
        %v2513 = vlaneseq
        %v2514 = vshrl.u32 %v2513, 7
        %v2515 = vsub.s32 %v2333, %v2514
        %v2516 = vrot.slane %v2028, %v2515
        %v2517 = vsel %vm2338, %v2516, %v2512
        %v2518 = vlaneseq
        %v2519 = vshrl.u32 %v2518, 7
        %v2520 = vsub.s32 %v2340, %v2519
        %v2521 = vrot.slane %v2031, %v2520
        %v2522 = vsel %vm2345, %v2521, %v2517
        %v2523 = vlaneseq
        %v2524 = vshrl.u32 %v2523, 7
        %v2525 = vsub.s32 %v2347, %v2524
        %v2526 = vrot.slane %v2034, %v2525
        %v2527 = vsel %vm2352, %v2526, %v2522
        %v2528 = vlaneseq
        %v2529 = vshrl.u32 %v2528, 7
        %v2530 = vsub.s32 %v2354, %v2529
        %v2531 = vrot.slane %v2037, %v2530
        %v2532 = vsel %vm2359, %v2531, %v2527
        %v2533 = vlaneseq
        %v2534 = vshrl.u32 %v2533, 7
        %v2535 = vsub.s32 %v2361, %v2534
        %v2536 = vrot.slane %v2040, %v2535
        %v2537 = vsel %vm2366, %v2536, %v2532
        %v2538 = vlaneseq
        %v2539 = vshrl.u32 %v2538, 7
        %v2540 = vsub.s32 %v2368, %v2539
        %v2541 = vrot.slane %v2043, %v2540
        %v2542 = vsel %vm2373, %v2541, %v2537
        %v2543 = vlaneseq
        %v2544 = vshrl.u32 %v2543, 7
        %v2545 = vsub.s32 %v2375, %v2544
        %v2546 = vrot.slane %v2046, %v2545
        %v2547 = vsel %vm2380, %v2546, %v2542
        %v2548 = vlaneseq
        %v2549 = vshrl.u32 %v2548, 7
        %v2550 = vsub.s32 %v2382, %v2549
        %v2551 = vrot.slane %v2049, %v2550
        %v2552 = vsel %vm2387, %v2551, %v2547
        %v2553 = vlaneseq
        %v2554 = vshrl.u32 %v2553, 7
        %v2555 = vsub.s32 %v2389, %v2554
        %v2556 = vrot.slane %v2052, %v2555
        %v2557 = vsel %vm2394, %v2556, %v2552
        %v2558 = vlaneseq
        %v2559 = vshrl.u32 %v2558, 7
        %v2560 = vsub.s32 %v2396, %v2559
        %v2561 = vrot.slane %v2055, %v2560
        %v2562 = vsel %vm2401, %v2561, %v2557
        %v2563 = vlaneseq
        %v2564 = vshrl.u32 %v2563, 7
        %v2565 = vsub.s32 %v2403, %v2564
        %v2566 = vrot.slane %v2058, %v2565
        %v2567 = vsel %vm2408, %v2566, %v2562
        %v2568 = vlaneseq
        %v2569 = vshrl.u32 %v2568, 7
        %v2570 = vsub.s32 %v2300, %v2569
        %v2571 = vrot.slane %v2061, %v2570
        %v2572 = vlaneseq
        %v2573 = vshrl.u32 %v2572, 7
        %v2574 = vsub.s32 %v2305, %v2573
        %v2575 = vrot.slane %v2064, %v2574
        %v2576 = vsel %vm2310, %v2575, %v2571
        %v2577 = vlaneseq
        %v2578 = vshrl.u32 %v2577, 7
        %v2579 = vsub.s32 %v2312, %v2578
        %v2580 = vrot.slane %v2067, %v2579
        %v2581 = vsel %vm2317, %v2580, %v2576
        %v2582 = vlaneseq
        %v2583 = vshrl.u32 %v2582, 7
        %v2584 = vsub.s32 %v2319, %v2583
        %v2585 = vrot.slane %v2070, %v2584
        %v2586 = vsel %vm2324, %v2585, %v2581
        %v2587 = vlaneseq
        %v2588 = vshrl.u32 %v2587, 7
        %v2589 = vsub.s32 %v2326, %v2588
        %v2590 = vrot.slane %v2073, %v2589
        %v2591 = vsel %vm2331, %v2590, %v2586
        %v2592 = vlaneseq
        %v2593 = vshrl.u32 %v2592, 7
        %v2594 = vsub.s32 %v2333, %v2593
        %v2595 = vrot.slane %v2076, %v2594
        %v2596 = vsel %vm2338, %v2595, %v2591
        %v2597 = vlaneseq
        %v2598 = vshrl.u32 %v2597, 7
        %v2599 = vsub.s32 %v2340, %v2598
        %v2600 = vrot.slane %v2079, %v2599
        %v2601 = vsel %vm2345, %v2600, %v2596
        %v2602 = vlaneseq
        %v2603 = vshrl.u32 %v2602, 7
        %v2604 = vsub.s32 %v2347, %v2603
        %v2605 = vrot.slane %v2082, %v2604
        %v2606 = vsel %vm2352, %v2605, %v2601
        %v2607 = vlaneseq
        %v2608 = vshrl.u32 %v2607, 7
        %v2609 = vsub.s32 %v2354, %v2608
        %v2610 = vrot.slane %v2085, %v2609
        %v2611 = vsel %vm2359, %v2610, %v2606
        %v2612 = vlaneseq
        %v2613 = vshrl.u32 %v2612, 7
        %v2614 = vsub.s32 %v2361, %v2613
        %v2615 = vrot.slane %v2088, %v2614
        %v2616 = vsel %vm2366, %v2615, %v2611
        %v2617 = vlaneseq
        %v2618 = vshrl.u32 %v2617, 7
        %v2619 = vsub.s32 %v2368, %v2618
        %v2620 = vrot.slane %v2091, %v2619
        %v2621 = vsel %vm2373, %v2620, %v2616
        %v2622 = vlaneseq
        %v2623 = vshrl.u32 %v2622, 7
        %v2624 = vsub.s32 %v2375, %v2623
        %v2625 = vrot.slane %v2094, %v2624
        %v2626 = vsel %vm2380, %v2625, %v2621
        %v2627 = vlaneseq
        %v2628 = vshrl.u32 %v2627, 7
        %v2629 = vsub.s32 %v2382, %v2628
        %v2630 = vrot.slane %v2097, %v2629
        %v2631 = vsel %vm2387, %v2630, %v2626
        %v2632 = vlaneseq
        %v2633 = vshrl.u32 %v2632, 7
        %v2634 = vsub.s32 %v2389, %v2633
        %v2635 = vrot.slane %v2100, %v2634
        %v2636 = vsel %vm2394, %v2635, %v2631
        %v2637 = vlaneseq
        %v2638 = vshrl.u32 %v2637, 7
        %v2639 = vsub.s32 %v2396, %v2638
        %v2640 = vrot.slane %v2103, %v2639
        %v2641 = vsel %vm2401, %v2640, %v2636
        %v2642 = vlaneseq
        %v2643 = vshrl.u32 %v2642, 7
        %v2644 = vsub.s32 %v2403, %v2643
        %v2645 = vrot.slane %v2106, %v2644
        %v2646 = vsel %vm2408, %v2645, %v2641
        %v2647 = vlaneseq
        %v2648 = vshrl.u32 %v2647, 7
        %v2649 = vsub.s32 %v2300, %v2648
        %v2650 = vrot.slane %v2109, %v2649
        %v2651 = vlaneseq
        %v2652 = vshrl.u32 %v2651, 7
        %v2653 = vsub.s32 %v2305, %v2652
        %v2654 = vrot.slane %v2112, %v2653
        %v2655 = vsel %vm2310, %v2654, %v2650
        %v2656 = vlaneseq
        %v2657 = vshrl.u32 %v2656, 7
        %v2658 = vsub.s32 %v2312, %v2657
        %v2659 = vrot.slane %v2115, %v2658
        %v2660 = vsel %vm2317, %v2659, %v2655
        %v2661 = vlaneseq
        %v2662 = vshrl.u32 %v2661, 7
        %v2663 = vsub.s32 %v2319, %v2662
        %v2664 = vrot.slane %v2118, %v2663
        %v2665 = vsel %vm2324, %v2664, %v2660
        %v2666 = vlaneseq
        %v2667 = vshrl.u32 %v2666, 7
        %v2668 = vsub.s32 %v2326, %v2667
        %v2669 = vrot.slane %v2121, %v2668
        %v2670 = vsel %vm2331, %v2669, %v2665
        %v2671 = vlaneseq
        %v2672 = vshrl.u32 %v2671, 7
        %v2673 = vsub.s32 %v2333, %v2672
        %v2674 = vrot.slane %v2124, %v2673
        %v2675 = vsel %vm2338, %v2674, %v2670
        %v2676 = vlaneseq
        %v2677 = vshrl.u32 %v2676, 7
        %v2678 = vsub.s32 %v2340, %v2677
        %v2679 = vrot.slane %v2127, %v2678
        %v2680 = vsel %vm2345, %v2679, %v2675
        %v2681 = vlaneseq
        %v2682 = vshrl.u32 %v2681, 7
        %v2683 = vsub.s32 %v2347, %v2682
        %v2684 = vrot.slane %v2130, %v2683
        %v2685 = vsel %vm2352, %v2684, %v2680
        %v2686 = vlaneseq
        %v2687 = vshrl.u32 %v2686, 7
        %v2688 = vsub.s32 %v2354, %v2687
        %v2689 = vrot.slane %v2133, %v2688
        %v2690 = vsel %vm2359, %v2689, %v2685
        %v2691 = vlaneseq
        %v2692 = vshrl.u32 %v2691, 7
        %v2693 = vsub.s32 %v2361, %v2692
        %v2694 = vrot.slane %v2136, %v2693
        %v2695 = vsel %vm2366, %v2694, %v2690
        %v2696 = vlaneseq
        %v2697 = vshrl.u32 %v2696, 7
        %v2698 = vsub.s32 %v2368, %v2697
        %v2699 = vrot.slane %v2139, %v2698
        %v2700 = vsel %vm2373, %v2699, %v2695
        %v2701 = vlaneseq
        %v2702 = vshrl.u32 %v2701, 7
        %v2703 = vsub.s32 %v2375, %v2702
        %v2704 = vrot.slane %v2142, %v2703
        %v2705 = vsel %vm2380, %v2704, %v2700
        %v2706 = vlaneseq
        %v2707 = vshrl.u32 %v2706, 7
        %v2708 = vsub.s32 %v2382, %v2707
        %v2709 = vrot.slane %v2145, %v2708
        %v2710 = vsel %vm2387, %v2709, %v2705
        %v2711 = vlaneseq
        %v2712 = vshrl.u32 %v2711, 7
        %v2713 = vsub.s32 %v2389, %v2712
        %v2714 = vrot.slane %v2148, %v2713
        %v2715 = vsel %vm2394, %v2714, %v2710
        %v2716 = vlaneseq
        %v2717 = vshrl.u32 %v2716, 7
        %v2718 = vsub.s32 %v2396, %v2717
        %v2719 = vrot.slane %v2151, %v2718
        %v2720 = vsel %vm2401, %v2719, %v2715
        %v2721 = vlaneseq
        %v2722 = vshrl.u32 %v2721, 7
        %v2723 = vsub.s32 %v2403, %v2722
        %v2724 = vrot.slane %v2154, %v2723
        %v2725 = vsel %vm2408, %v2724, %v2720
        %v2726 = vlaneseq
        %v2727 = vshrl.u32 %v2726, 7
        %v2728 = vsub.s32 %v2300, %v2727
        %v2729 = vrot.slane %v2157, %v2728
        %v2730 = vlaneseq
        %v2731 = vshrl.u32 %v2730, 7
        %v2732 = vsub.s32 %v2305, %v2731
        %v2733 = vrot.slane %v2160, %v2732
        %v2734 = vsel %vm2310, %v2733, %v2729
        %v2735 = vlaneseq
        %v2736 = vshrl.u32 %v2735, 7
        %v2737 = vsub.s32 %v2312, %v2736
        %v2738 = vrot.slane %v2163, %v2737
        %v2739 = vsel %vm2317, %v2738, %v2734
        %v2740 = vlaneseq
        %v2741 = vshrl.u32 %v2740, 7
        %v2742 = vsub.s32 %v2319, %v2741
        %v2743 = vrot.slane %v2166, %v2742
        %v2744 = vsel %vm2324, %v2743, %v2739
        %v2745 = vlaneseq
        %v2746 = vshrl.u32 %v2745, 7
        %v2747 = vsub.s32 %v2326, %v2746
        %v2748 = vrot.slane %v2169, %v2747
        %v2749 = vsel %vm2331, %v2748, %v2744
        %v2750 = vlaneseq
        %v2751 = vshrl.u32 %v2750, 7
        %v2752 = vsub.s32 %v2333, %v2751
        %v2753 = vrot.slane %v2172, %v2752
        %v2754 = vsel %vm2338, %v2753, %v2749
        %v2755 = vlaneseq
        %v2756 = vshrl.u32 %v2755, 7
        %v2757 = vsub.s32 %v2340, %v2756
        %v2758 = vrot.slane %v2175, %v2757
        %v2759 = vsel %vm2345, %v2758, %v2754
        %v2760 = vlaneseq
        %v2761 = vshrl.u32 %v2760, 7
        %v2762 = vsub.s32 %v2347, %v2761
        %v2763 = vrot.slane %v2178, %v2762
        %v2764 = vsel %vm2352, %v2763, %v2759
        %v2765 = vlaneseq
        %v2766 = vshrl.u32 %v2765, 7
        %v2767 = vsub.s32 %v2354, %v2766
        %v2768 = vrot.slane %v2181, %v2767
        %v2769 = vsel %vm2359, %v2768, %v2764
        %v2770 = vlaneseq
        %v2771 = vshrl.u32 %v2770, 7
        %v2772 = vsub.s32 %v2361, %v2771
        %v2773 = vrot.slane %v2184, %v2772
        %v2774 = vsel %vm2366, %v2773, %v2769
        %v2775 = vlaneseq
        %v2776 = vshrl.u32 %v2775, 7
        %v2777 = vsub.s32 %v2368, %v2776
        %v2778 = vrot.slane %v2187, %v2777
        %v2779 = vsel %vm2373, %v2778, %v2774
        %v2780 = vlaneseq
        %v2781 = vshrl.u32 %v2780, 7
        %v2782 = vsub.s32 %v2375, %v2781
        %v2783 = vrot.slane %v2190, %v2782
        %v2784 = vsel %vm2380, %v2783, %v2779
        %v2785 = vlaneseq
        %v2786 = vshrl.u32 %v2785, 7
        %v2787 = vsub.s32 %v2382, %v2786
        %v2788 = vrot.slane %v2193, %v2787
        %v2789 = vsel %vm2387, %v2788, %v2784
        %v2790 = vlaneseq
        %v2791 = vshrl.u32 %v2790, 7
        %v2792 = vsub.s32 %v2389, %v2791
        %v2793 = vrot.slane %v2196, %v2792
        %v2794 = vsel %vm2394, %v2793, %v2789
        %v2795 = vlaneseq
        %v2796 = vshrl.u32 %v2795, 7
        %v2797 = vsub.s32 %v2396, %v2796
        %v2798 = vrot.slane %v2199, %v2797
        %v2799 = vsel %vm2401, %v2798, %v2794
        %v2800 = vlaneseq
        %v2801 = vshrl.u32 %v2800, 7
        %v2802 = vsub.s32 %v2403, %v2801
        %v2803 = vrot.slane %v2202, %v2802
        %v2804 = vsel %vm2408, %v2803, %v2799
        %v2805 = vlaneseq
        %v2806 = vshrl.u32 %v2805, 7
        %v2807 = vsub.s32 %v2300, %v2806
        %v2808 = vrot.slane %v2205, %v2807
        %v2809 = vlaneseq
        %v2810 = vshrl.u32 %v2809, 7
        %v2811 = vsub.s32 %v2305, %v2810
        %v2812 = vrot.slane %v2208, %v2811
        %v2813 = vsel %vm2310, %v2812, %v2808
        %v2814 = vlaneseq
        %v2815 = vshrl.u32 %v2814, 7
        %v2816 = vsub.s32 %v2312, %v2815
        %v2817 = vrot.slane %v2211, %v2816
        %v2818 = vsel %vm2317, %v2817, %v2813
        %v2819 = vlaneseq
        %v2820 = vshrl.u32 %v2819, 7
        %v2821 = vsub.s32 %v2319, %v2820
        %v2822 = vrot.slane %v2214, %v2821
        %v2823 = vsel %vm2324, %v2822, %v2818
        %v2824 = vlaneseq
        %v2825 = vshrl.u32 %v2824, 7
        %v2826 = vsub.s32 %v2326, %v2825
        %v2827 = vrot.slane %v2217, %v2826
        %v2828 = vsel %vm2331, %v2827, %v2823
        %v2829 = vlaneseq
        %v2830 = vshrl.u32 %v2829, 7
        %v2831 = vsub.s32 %v2333, %v2830
        %v2832 = vrot.slane %v2220, %v2831
        %v2833 = vsel %vm2338, %v2832, %v2828
        %v2834 = vlaneseq
        %v2835 = vshrl.u32 %v2834, 7
        %v2836 = vsub.s32 %v2340, %v2835
        %v2837 = vrot.slane %v2223, %v2836
        %v2838 = vsel %vm2345, %v2837, %v2833
        %v2839 = vlaneseq
        %v2840 = vshrl.u32 %v2839, 7
        %v2841 = vsub.s32 %v2347, %v2840
        %v2842 = vrot.slane %v2226, %v2841
        %v2843 = vsel %vm2352, %v2842, %v2838
        %v2844 = vlaneseq
        %v2845 = vshrl.u32 %v2844, 7
        %v2846 = vsub.s32 %v2354, %v2845
        %v2847 = vrot.slane %v2229, %v2846
        %v2848 = vsel %vm2359, %v2847, %v2843
        %v2849 = vlaneseq
        %v2850 = vshrl.u32 %v2849, 7
        %v2851 = vsub.s32 %v2361, %v2850
        %v2852 = vrot.slane %v2232, %v2851
        %v2853 = vsel %vm2366, %v2852, %v2848
        %v2854 = vlaneseq
        %v2855 = vshrl.u32 %v2854, 7
        %v2856 = vsub.s32 %v2368, %v2855
        %v2857 = vrot.slane %v2235, %v2856
        %v2858 = vsel %vm2373, %v2857, %v2853
        %v2859 = vlaneseq
        %v2860 = vshrl.u32 %v2859, 7
        %v2861 = vsub.s32 %v2375, %v2860
        %v2862 = vrot.slane %v2238, %v2861
        %v2863 = vsel %vm2380, %v2862, %v2858
        %v2864 = vlaneseq
        %v2865 = vshrl.u32 %v2864, 7
        %v2866 = vsub.s32 %v2382, %v2865
        %v2867 = vrot.slane %v2241, %v2866
        %v2868 = vsel %vm2387, %v2867, %v2863
        %v2869 = vlaneseq
        %v2870 = vshrl.u32 %v2869, 7
        %v2871 = vsub.s32 %v2389, %v2870
        %v2872 = vrot.slane %v2244, %v2871
        %v2873 = vsel %vm2394, %v2872, %v2868
        %v2874 = vlaneseq
        %v2875 = vshrl.u32 %v2874, 7
        %v2876 = vsub.s32 %v2396, %v2875
        %v2877 = vrot.slane %v2247, %v2876
        %v2878 = vsel %vm2401, %v2877, %v2873
        %v2879 = vlaneseq
        %v2880 = vshrl.u32 %v2879, 7
        %v2881 = vsub.s32 %v2403, %v2880
        %v2882 = vrot.slane %v2250, %v2881
        %v2883 = vsel %vm2408, %v2882, %v2878
        %v2884 = vlaneseq
        %v2885 = vshrl.u32 %v2884, 7
        %v2886 = vsub.s32 %v2300, %v2885
        %v2887 = vrot.slane %v2253, %v2886
        %v2888 = vlaneseq
        %v2889 = vshrl.u32 %v2888, 7
        %v2890 = vsub.s32 %v2305, %v2889
        %v2891 = vrot.slane %v2256, %v2890
        %v2892 = vsel %vm2310, %v2891, %v2887
        %v2893 = vlaneseq
        %v2894 = vshrl.u32 %v2893, 7
        %v2895 = vsub.s32 %v2312, %v2894
        %v2896 = vrot.slane %v2259, %v2895
        %v2897 = vsel %vm2317, %v2896, %v2892
        %v2898 = vlaneseq
        %v2899 = vshrl.u32 %v2898, 7
        %v2900 = vsub.s32 %v2319, %v2899
        %v2901 = vrot.slane %v2262, %v2900
        %v2902 = vsel %vm2324, %v2901, %v2897
        %v2903 = vlaneseq
        %v2904 = vshrl.u32 %v2903, 7
        %v2905 = vsub.s32 %v2326, %v2904
        %v2906 = vrot.slane %v2265, %v2905
        %v2907 = vsel %vm2331, %v2906, %v2902
        %v2908 = vlaneseq
        %v2909 = vshrl.u32 %v2908, 7
        %v2910 = vsub.s32 %v2333, %v2909
        %v2911 = vrot.slane %v2268, %v2910
        %v2912 = vsel %vm2338, %v2911, %v2907
        %v2913 = vlaneseq
        %v2914 = vshrl.u32 %v2913, 7
        %v2915 = vsub.s32 %v2340, %v2914
        %v2916 = vrot.slane %v2271, %v2915
        %v2917 = vsel %vm2345, %v2916, %v2912
        %v2918 = vlaneseq
        %v2919 = vshrl.u32 %v2918, 7
        %v2920 = vsub.s32 %v2347, %v2919
        %v2921 = vrot.slane %v2274, %v2920
        %v2922 = vsel %vm2352, %v2921, %v2917
        %v2923 = vlaneseq
        %v2924 = vshrl.u32 %v2923, 7
        %v2925 = vsub.s32 %v2354, %v2924
        %v2926 = vrot.slane %v2277, %v2925
        %v2927 = vsel %vm2359, %v2926, %v2922
        %v2928 = vlaneseq
        %v2929 = vshrl.u32 %v2928, 7
        %v2930 = vsub.s32 %v2361, %v2929
        %v2931 = vrot.slane %v2280, %v2930
        %v2932 = vsel %vm2366, %v2931, %v2927
        %v2933 = vlaneseq
        %v2934 = vshrl.u32 %v2933, 7
        %v2935 = vsub.s32 %v2368, %v2934
        %v2936 = vrot.slane %v2283, %v2935
        %v2937 = vsel %vm2373, %v2936, %v2932
        %v2938 = vlaneseq
        %v2939 = vshrl.u32 %v2938, 7
        %v2940 = vsub.s32 %v2375, %v2939
        %v2941 = vrot.slane %v2286, %v2940
        %v2942 = vsel %vm2380, %v2941, %v2937
        %v2943 = vlaneseq
        %v2944 = vshrl.u32 %v2943, 7
        %v2945 = vsub.s32 %v2382, %v2944
        %v2946 = vrot.slane %v2289, %v2945
        %v2947 = vsel %vm2387, %v2946, %v2942
        %v2948 = vlaneseq
        %v2949 = vshrl.u32 %v2948, 7
        %v2950 = vsub.s32 %v2389, %v2949
        %v2951 = vrot.slane %v2292, %v2950
        %v2952 = vsel %vm2394, %v2951, %v2947
        %v2953 = vlaneseq
        %v2954 = vshrl.u32 %v2953, 7
        %v2955 = vsub.s32 %v2396, %v2954
        %v2956 = vrot.slane %v2295, %v2955
        %v2957 = vsel %vm2401, %v2956, %v2952
        %v2958 = vlaneseq
        %v2959 = vshrl.u32 %v2958, 7
        %v2960 = vsub.s32 %v2403, %v2959
        %v2961 = vrot.slane %v2298, %v2960
        %v2962 = vsel %vm2408, %v2961, %v2957
        %vm2963 = vcmask 1041409
        %v2964 = vsel %vm2963, %v2488, %v2409
        %vm2965 = vcmask 1042434
        %v2966 = vsel %vm2965, %v2567, %v2964
        %vm2967 = vcmask 1043459
        %v2968 = vsel %vm2967, %v2646, %v2966
        %vm2969 = vcmask 1044484
        %v2970 = vsel %vm2969, %v2725, %v2968
        %vm2971 = vcmask 1045509
        %v2972 = vsel %vm2971, %v2804, %v2970
        %vm2973 = vcmask 1046534
        %v2974 = vsel %vm2973, %v2883, %v2972
        %vm2975 = vcmask 1047559
        %v2976 = vsel %vm2975, %v2962, %v2974
        %v2978 = vsel %vm1786, -10000.0, %v2976
        %v2979 = vxor.u32 %v2978, 2147483648
        %v2980 = vmul.f32 %v2979, 1.442695
        %v2981 = vpow.pop %v2980
        %v2982 = vadd.f32 %v2981, 1.0
        %v2983 = vrcp.pop %v2982
        %v2984 = vmul.f32 1.0, %v2983
        %2985 = vst [vmem:[%s372] sm:$0xff] %v2984
        %s2986 = sand.u32 %s242, 1
        %s2987 = scalar_lea.sflag [#allocation3], %s2986
        %s2988 = sand.u32 %s242, 1
        %s2989 = smul.addr %s2988, 8
        %s2990 = scalar_lea.vmem [#allocation2], %s2989
        // Predicated region
        $region53: #{tpu_custom_call.1} parent=51 // pred_check
          %p2991 = pneg %p252
        $region54: #{tpu_custom_call.1} parent=51 // pred_check_branch
          %2993 = sbr.rel (%p2991) target = $region56
        $region55: #{tpu_custom_call.1} parent=51 // pred_region
          %s2995 = ssub.s32 128, 128
          %2996 = vsyncadd %s2987, %s2995
          %s2997 = sadd.s32 %s28, %s29
          %s2998 = sadd.s32 %s2997, %s27
          %s2999 = smul.addr %s2998, 128
          %s3000 = scalar_lea.hbm %s8, %s2999
          %s3002 = sshll.u32 %s2990, 4
          %s3003 = int_to_ptr.vmem [resolvable:$true] %s3002
          %3005 = dma.vmem_to_hbm [thread:$0]  %s3003, 128, %s3000, %s2987
        $region56: #{tpu_custom_call.1} parent=51 // pred_fallthru
          _
      $region52: #{tpu_custom_call.1} parent=5 // pred_fallthru
        _
      %p3006 = scmp.le.s32.totalorder 2, %s17
      // Predicated region
      $region57: #{tpu_custom_call.1} parent=5 // pred_check
        %p3007 = pneg %p3006
      $region58: #{tpu_custom_call.1} parent=5 // pred_check_branch
        %3009 = sbr.rel (%p3007) target = $region60
      $region59: #{tpu_custom_call.1} parent=5 // pred_region
        %s3010 = ssub.s32 %s17, 2
        // Predicated region
        $region61: #{tpu_custom_call.1} parent=59 // pred_check
          %p3011 = pneg %p258
        $region62: #{tpu_custom_call.1} parent=59 // pred_check_branch
          %3013 = sbr.rel (%p3011) target = $region64
        $region63: #{tpu_custom_call.1} parent=59 // pred_region
          %s3014 = sand.u32 %s243, 1
          %s3015 = scalar_lea.sflag [#allocation3], %s3014
          %s3016 = sand.u32 %s243, 1
          %s3017 = smul.addr %s3016, 8
          %s3018 = scalar_lea.vmem [#allocation2], %s3017
          %3019 = dma.done %s3015, 128
        $region64: #{tpu_custom_call.1} parent=59 // pred_fallthru
          _
      $region60: #{tpu_custom_call.1} parent=5 // pred_fallthru
        _
    $region6: #{tpu_custom_call.1} parent=1 // loop_footer
      %s21 = sadd.s32 1, %s17
    $region7: #{tpu_custom_call.1} parent=1 // loop_footer_branch
      %16 = sbr.rel target = $region3
    $region8: #{tpu_custom_call.1} parent=1 // loop_exit
      _
    %3020 = vsyncpa [#allocation3], 1
    %s3021 = scalar_lea.sflag [#allocation3], 1
    %3022 = vsyncpa %s3021, 1

</llo_original>
